<compile_context>
chip_gen: v7x
topology: tpu7x:2x2x1
jax: 0.10.0
libtpu: 0.0.40
codegen_flags: <defaults>
</compile_context>

<pallas_src>
import functools

import jax
import jax.numpy as jnp
import numpy as np
from jax.experimental import pallas as pl
from jax.experimental.pallas import tpu as pltpu


def _round_up(x, m):
    return ((x + m - 1) // m) * m


def _conv2_kernel(xa_ref, xb_ref, w_ref, shift_ref, o_ref, acc_ref, *, wt):
    """One (row-band, C2-tile) step of Conv2 forward.

    xa_ref    : (tm, Kc)     dx-folded input rows [b*tm, b*tm + tm)
    xb_ref    : (2*wt, Kc)   dy-halo: rows [(b+1)*tm, (b+1)*tm + 2*wt)
    w_ref     : (3, Kc, tn)  per-dy weights (dx taps, 1x1 branch, BN scale folded)
    shift_ref : (1, tn)      fused BatchNorm shift (f32)
    o_ref     : (tm, tn)     output rows of the padded-width raster
    acc_ref   : (tm, tn)     f32 accumulator scratch
    All row offsets below are multiples of wt (itself a multiple of 8/16),
    so every slice is sublane-aligned.
    """
    tm = o_ref.shape[0]
    # dy = 0: whole band.
    acc_ref[...] = jnp.dot(xa_ref[...], w_ref[0],
                           preferred_element_type=jnp.float32)
    # dy = 1: split across the A/B band boundary.
    acc_ref[0:tm - wt, :] = acc_ref[0:tm - wt, :] + jnp.dot(
        xa_ref[wt:tm, :], w_ref[1], preferred_element_type=jnp.float32)
    acc_ref[tm - wt:tm, :] = acc_ref[tm - wt:tm, :] + jnp.dot(
        xb_ref[0:wt, :], w_ref[1], preferred_element_type=jnp.float32)
    # dy = 2.
    acc_ref[0:tm - 2 * wt, :] = acc_ref[0:tm - 2 * wt, :] + jnp.dot(
        xa_ref[2 * wt:tm, :], w_ref[2], preferred_element_type=jnp.float32)
    acc_ref[tm - 2 * wt:tm, :] = acc_ref[tm - 2 * wt:tm, :] + jnp.dot(
        xb_ref[0:2 * wt, :], w_ref[2], preferred_element_type=jnp.float32)
    # Fused BatchNorm shift (f32) then SiLU in the output dtype (bf16 epilogue
    # on the fast path; on v5e the VPU/EUP upcast internally — still correct).
    y = (acc_ref[...] + shift_ref[...]).astype(o_ref.dtype)
    o_ref[...] = y * jax.nn.sigmoid(y)


def conv2_forward(x_nchw, w3, w1, gamma, beta, run_mean, run_var, *,
                  eps=1e-5, compute_dtype=jnp.bfloat16,
                  max_rows=4096, vmem_budget_bytes=28 * 1024 * 1024):
    """Conv2.forward. x_nchw: (N, C1, H, W) f32. Returns (N, C2, H, W) f32."""
    N, C1, H, W = x_nchw.shape
    C2, _, K, _ = w3.shape
    assert K == 3 and w3.shape == (C2, C1, K, K) and w1.shape == (C2, C1, 1, 1)

    pad = K // 2
    dtb = jnp.dtype(compute_dtype).itemsize
    sub = 16 if dtb == 2 else 8               # bf16 native second-minor tile = 16
    Wt = _round_up(W + 2 * pad, sub)          # aligned padded raster width
    C1p = _round_up(C1, sub)                  # padded input channels
    Kc = 3 * C1p                              # dx-folded contraction depth
    C2p = _round_up(C2, 128)                  # lane-dense output columns

    # C2 tile: keep the resident weight slab small for big channel counts (v7x).
    tn = C2p
    if C2p > 512:
        for cand in (512, 384, 256, 128):
            if C2p % cand == 0:
                tn = cand
                break
    nj = C2p // tn

    # ---- shape/VMEM-aware row-band size (tm = m * Wt, m even, m >= 4) -------
    rows_out = H * Wt                         # flat output raster rows
    per_row = 2 * Kc * dtb + 2 * tn * dtb + tn * 4      # x-band(2x) + out(2x) + acc
    fixed = (2 * 3 * Kc * tn * dtb            # weights, double buffered
             + 2 * 2 * Wt * Kc * dtb          # dy-halo block, double buffered
             + 2 * tn * 4)                    # shift
    m_budget = max((vmem_budget_bytes - fixed) // (per_row * Wt), 4)
    m_need = _round_up((rows_out + Wt - 1) // Wt, 2)
    m = int(max(4, min(m_budget, max_rows // Wt, m_need)))
    m -= m % 2                                # halo BlockSpec index needs even m
    m = max(m, 4)
    tm = m * Wt
    half_m = m // 2
    nb = (rows_out + tm - 1) // tm

    # ---- glue (plain JAX): NHWC, aligned pad, dx fold into channel dim ------
    x = jnp.transpose(x_nchw, (0, 2, 3, 1)).astype(compute_dtype)        # NHWC
    x = jnp.pad(x, ((0, 0), (pad, pad), (pad, Wt - W - pad), (0, C1p - C1)))
    xf = x.reshape(N, (H + 2 * pad) * Wt, C1p)            # flat padded raster
    rows_x3 = nb * tm + 2 * Wt                             # bands + dy halo
    xf = jnp.pad(xf, ((0, 0), (0, rows_x3 + 2 - (H + 2 * pad) * Wt), (0, 0)))
    # dx fold: row r carries pixels (r, r+1, r+2) -> contraction depth 3*C1p;
    # only sublane-aligned dy*Wt row shifts remain for the kernel.
    x3 = jnp.concatenate([xf[:, 0:rows_x3],
                          xf[:, 1:rows_x3 + 1],
                          xf[:, 2:rows_x3 + 2]], axis=-1)  # (N, rows_x3, Kc)

    # ---- weights: fold 1x1 branch into centre tap (== fuse_convs), fold BN
    # scale into output columns, group dx along the contraction dim. ----------
    scale = gamma / jnp.sqrt(run_var + eps)
    shift = beta - run_mean * scale
    wk = jnp.transpose(w3, (2, 3, 1, 0))                   # (3, 3, C1, C2)
    wk = wk.at[pad, pad].add(jnp.transpose(w1[:, :, 0, 0]))
    wk = wk * scale                                        # BN scale fold (f32)
    wk = jnp.pad(wk, ((0, 0), (0, 0), (0, C1p - C1), (0, C2p - C2)))
    wk = wk.reshape(3, Kc, C2p).astype(compute_dtype)      # rows: dx*C1p + ci
    shift_p = jnp.pad(shift, (0, C2p - C2)).reshape(1, C2p).astype(jnp.float32)

    kernel = functools.partial(_conv2_kernel, wt=Wt)

    # VMEM limit derived from the per-step working set; capped at 48 MiB so it
    # leaves headroom on v7x (64 MiB physical) and is still generous on v5e/v6e.
    est_vmem = fixed + tm * per_row
    vmem_limit = int(min(48 * 1024 * 1024,
                         max(32 * 1024 * 1024, est_vmem * 5 // 4)))

    cost = pl.CostEstimate(
        flops=int(2 * N * nb * tm * 3 * Kc * C2p),
        transcendentals=int(N * nb * tm * C2p),
        bytes_accessed=int(x3.size * dtb + wk.size * dtb
                           + N * nb * tm * C2p * dtb + shift_p.size * 4))

    out = pl.pallas_call(
        kernel,
        out_shape=jax.ShapeDtypeStruct((N, nb * tm, C2p), compute_dtype),
        grid_spec=pltpu.PrefetchScalarGridSpec(
            num_scalar_prefetch=0,
            grid=(N, nb, nj),
            in_specs=[
                # main row band (auto-pipelined, non-overlapping blocks)
                pl.BlockSpec((None, tm, Kc), lambda n, b, j: (n, b, 0)),
                # dy halo: first 2*Wt rows of the next band (no gather, no manual DMA)
                pl.BlockSpec((None, 2 * Wt, Kc),
                             lambda n, b, j: (n, (b + 1) * half_m, 0)),
                # per-dy weights (resident; streamed over C2 tiles when nj > 1)
                pl.BlockSpec((3, Kc, tn), lambda n, b, j: (0, 0, j)),
                # fused BN shift
                pl.BlockSpec((1, tn), lambda n, b, j: (0, j)),
            ],
            out_specs=pl.BlockSpec((None, tm, tn), lambda n, b, j: (n, b, j)),
            scratch_shapes=[pltpu.VMEM((tm, tn), jnp.float32)],
        ),
        compiler_params=pltpu.CompilerParams(
            dimension_semantics=("parallel", "parallel", "parallel"),
            vmem_limit_bytes=vmem_limit),
        cost_estimate=cost,
    )(x3, x3, wk, shift_p)

    # ---- glue: un-pad, back to PyTorch NCHW layout --------------------------
    out = out[:, :rows_out].reshape(N, H, Wt, C2p)[:, :, :W, :C2]
    return jnp.transpose(out, (0, 3, 1, 2)).astype(x_nchw.dtype)


def _reference(x_nchw, w3, w1, gamma, beta, run_mean, run_var, eps=1e-5):
    """Pure-JAX f32 reference (module-faithful)."""
    dn = ("NCHW", "OIHW", "NCHW")
    y3 = jax.lax.conv_general_dilated(x_nchw, w3, (1, 1), ((1, 1), (1, 1)),
                                      dimension_numbers=dn)
    y1 = jax.lax.conv_general_dilated(x_nchw, w1, (1, 1), ((0, 0), (0, 0)),
                                      dimension_numbers=dn)
    y = y3 + y1
    sc = (gamma / jnp.sqrt(run_var + eps)).reshape(1, -1, 1, 1)
    sh = (beta - run_mean * gamma / jnp.sqrt(run_var + eps)).reshape(1, -1, 1, 1)
    y = y * sc + sh
    return y * jax.nn.sigmoid(y)


if __name__ == "__main__":
    key = jax.random.PRNGKey(0)
    kx, kw3, kw1, kg, kb, km, kv = jax.random.split(key, 7)

    N, C1, C2, H, W, K = 2, 4, 8, 16, 16, 3

    x = jax.random.normal(kx, (N, C1, H, W), dtype=jnp.float32)
    # Conv2d weights (PyTorch OIHW layout), bias=False.
    w3 = jax.random.normal(kw3, (C2, C1, K, K), dtype=jnp.float32) * 0.1
    w1 = jax.random.normal(kw1, (C2, C1, 1, 1), dtype=jnp.float32) * 0.1
    # BatchNorm2d params / running stats (deterministic synthetic values).
    gamma = 0.5 + jax.random.uniform(kg, (C2,), dtype=jnp.float32)
    beta = 0.1 * jax.random.normal(kb, (C2,), dtype=jnp.float32)
    run_mean = 0.1 * jax.random.normal(km, (C2,), dtype=jnp.float32)
    run_var = 0.5 + jax.random.uniform(kv, (C2,), dtype=jnp.float32)

    ref = _reference(x, w3, w1, gamma, beta, run_mean, run_var)

    # f32-operand path: tight correctness check.
    fwd_f32 = jax.jit(functools.partial(conv2_forward,
                                        compute_dtype=jnp.float32))
    out_f32 = jax.block_until_ready(
        fwd_f32(x, w3, w1, gamma, beta, run_mean, run_var))
    np.testing.assert_allclose(np.asarray(out_f32), np.asarray(ref),
                               rtol=5e-4, atol=5e-4)

    # Fast path (bf16 MXU operands / bf16 epilogue, f32 accumulate + BN shift):
    # loose sanity check against the f32 reference.
    fwd = jax.jit(conv2_forward)
    out = jax.block_until_ready(fwd(x, w3, w1, gamma, beta, run_mean, run_var))
    np.testing.assert_allclose(np.asarray(out), np.asarray(ref),
                               rtol=1e-1, atol=1e-1)

    print("KERNEL_OK")
</pallas_src>

<mosaic_0001>
module attributes {stable_mosaic.version = 11 : i64} {
  func.func @_conv2_kernel(%arg0: i32, %arg1: i32, %arg2: i32, %arg3: memref<1x384x24xf32, #tpu.memory_space<vmem>>, %arg4: memref<1x48x24xf32, #tpu.memory_space<vmem>>, %arg5: memref<3x24x128xf32, #tpu.memory_space<vmem>>, %arg6: memref<1x128xf32, #tpu.memory_space<vmem>>, %arg7: memref<1x384x128xf32, #tpu.memory_space<vmem>>, %arg8: memref<384x128xf32, #tpu.memory_space<vmem>>) attributes {dimension_semantics = [#tpu.dimension_semantics<parallel>, #tpu.dimension_semantics<parallel>, #tpu.dimension_semantics<parallel>], iteration_bounds = array<i64: 2, 1, 1>, scalar_prefetch = 0 : i64, scratch_operands = 1 : i64, tpu.core_type = #tpu.core_type<tc>, window_params = [{transform_indices = @transform_0, window_bounds = array<i64: 1, 384, 24>}, {transform_indices = @transform_1, window_bounds = array<i64: 1, 48, 24>}, {transform_indices = @transform_2, window_bounds = array<i64: 3, 24, 128>}, {transform_indices = @transform_3, window_bounds = array<i64: 1, 128>}, {transform_indices = @transform_4, window_bounds = array<i64: 1, 384, 128>}]} {
    %c0 = arith.constant 0 : index
    %c0_0 = arith.constant 0 : index
    %c0_1 = arith.constant 0 : index
    %0 = vector.load %arg3[%c0, %c0_0, %c0_1] : memref<1x384x24xf32, #tpu.memory_space<vmem>>, vector<1x384x24xf32>
    %1 = vector.shape_cast %0 : vector<1x384x24xf32> to vector<384x24xf32>
    %c0_2 = arith.constant 0 : index
    %c0_3 = arith.constant 0 : index
    %c0_4 = arith.constant 0 : index
    %2 = vector.load %arg5[%c0_2, %c0_3, %c0_4] : memref<3x24x128xf32, #tpu.memory_space<vmem>>, vector<1x24x128xf32>
    %3 = vector.shape_cast %2 : vector<1x24x128xf32> to vector<24x128xf32>
    %cst = arith.constant dense<0.000000e+00> : vector<384x128xf32>
    %4 = tpu.matmul %1, %3, %cst {dimension_numbers = #tpu.dot_dimension_numbers<[1], [0], [0], [1], [0, 0, 1, 1], [], []>} : vector<384x24xf32>, vector<24x128xf32>, vector<384x128xf32> -> vector<384x128xf32>
    %c0_5 = arith.constant 0 : index
    %c0_6 = arith.constant 0 : index
    %5 = vector.load %arg8[%c0_5, %c0_6] : memref<384x128xf32, #tpu.memory_space<vmem>>, vector<384x128xf32>
    tpu.vector_store %arg8[%c0_5, %c0_6], %4 {strides = array<i32>} : memref<384x128xf32, #tpu.memory_space<vmem>>, vector<384x128xf32>,
    %c0_7 = arith.constant 0 : index
    %c0_8 = arith.constant 0 : index
    %6 = vector.load %arg8[%c0_7, %c0_8] : memref<384x128xf32, #tpu.memory_space<vmem>>, vector<360x128xf32>
    %c0_9 = arith.constant 0 : index
    %c24 = arith.constant 24 : index
    %c0_10 = arith.constant 0 : index
    %7 = vector.load %arg3[%c0_9, %c24, %c0_10] : memref<1x384x24xf32, #tpu.memory_space<vmem>>, vector<1x360x24xf32>
    %8 = vector.shape_cast %7 : vector<1x360x24xf32> to vector<360x24xf32>
    %c1 = arith.constant 1 : index
    %c0_11 = arith.constant 0 : index
    %c0_12 = arith.constant 0 : index
    %9 = vector.load %arg5[%c1, %c0_11, %c0_12] : memref<3x24x128xf32, #tpu.memory_space<vmem>>, vector<1x24x128xf32>
    %10 = vector.shape_cast %9 : vector<1x24x128xf32> to vector<24x128xf32>
    %cst_13 = arith.constant dense<0.000000e+00> : vector<360x128xf32>
    %11 = tpu.matmul %8, %10, %cst_13 {dimension_numbers = #tpu.dot_dimension_numbers<[1], [0], [0], [1], [0, 0, 1, 1], [], []>} : vector<360x24xf32>, vector<24x128xf32>, vector<360x128xf32> -> vector<360x128xf32>
    %12 = arith.addf %6, %11 : vector<360x128xf32>
    %c0_14 = arith.constant 0 : index
    %c0_15 = arith.constant 0 : index
    %13 = vector.load %arg8[%c0_14, %c0_15] : memref<384x128xf32, #tpu.memory_space<vmem>>, vector<360x128xf32>
    tpu.vector_store %arg8[%c0_14, %c0_15], %12 {strides = array<i32>} : memref<384x128xf32, #tpu.memory_space<vmem>>, vector<360x128xf32>,
    %c360 = arith.constant 360 : index
    %c0_16 = arith.constant 0 : index
    %14 = vector.load %arg8[%c360, %c0_16] : memref<384x128xf32, #tpu.memory_space<vmem>>, vector<24x128xf32>
    %c0_17 = arith.constant 0 : index
    %c0_18 = arith.constant 0 : index
    %c0_19 = arith.constant 0 : index
    %15 = vector.load %arg4[%c0_17, %c0_18, %c0_19] : memref<1x48x24xf32, #tpu.memory_space<vmem>>, vector<1x24x24xf32>
    %16 = vector.shape_cast %15 : vector<1x24x24xf32> to vector<24x24xf32>
    %c1_20 = arith.constant 1 : index
    %c0_21 = arith.constant 0 : index
    %c0_22 = arith.constant 0 : index
    %17 = vector.load %arg5[%c1_20, %c0_21, %c0_22] : memref<3x24x128xf32, #tpu.memory_space<vmem>>, vector<1x24x128xf32>
    %18 = vector.shape_cast %17 : vector<1x24x128xf32> to vector<24x128xf32>
    %cst_23 = arith.constant dense<0.000000e+00> : vector<24x128xf32>
    %19 = tpu.matmul %16, %18, %cst_23 {dimension_numbers = #tpu.dot_dimension_numbers<[1], [0], [0], [1], [0, 0, 1, 1], [], []>} : vector<24x24xf32>, vector<24x128xf32>, vector<24x128xf32> -> vector<24x128xf32>
    %20 = arith.addf %14, %19 : vector<24x128xf32>
    %c360_24 = arith.constant 360 : index
    %c0_25 = arith.constant 0 : index
    %21 = vector.load %arg8[%c360_24, %c0_25] : memref<384x128xf32, #tpu.memory_space<vmem>>, vector<24x128xf32>
    tpu.vector_store %arg8[%c360_24, %c0_25], %20 {strides = array<i32>} : memref<384x128xf32, #tpu.memory_space<vmem>>, vector<24x128xf32>,
    %c0_26 = arith.constant 0 : index
    %c0_27 = arith.constant 0 : index
    %22 = vector.load %arg8[%c0_26, %c0_27] : memref<384x128xf32, #tpu.memory_space<vmem>>, vector<336x128xf32>
    %c0_28 = arith.constant 0 : index
    %c48 = arith.constant 48 : index
    %c0_29 = arith.constant 0 : index
    %23 = vector.load %arg3[%c0_28, %c48, %c0_29] : memref<1x384x24xf32, #tpu.memory_space<vmem>>, vector<1x336x24xf32>
    %24 = vector.shape_cast %23 : vector<1x336x24xf32> to vector<336x24xf32>
    %c2 = arith.constant 2 : index
    %c0_30 = arith.constant 0 : index
    %c0_31 = arith.constant 0 : index
    %25 = vector.load %arg5[%c2, %c0_30, %c0_31] : memref<3x24x128xf32, #tpu.memory_space<vmem>>, vector<1x24x128xf32>
    %26 = vector.shape_cast %25 : vector<1x24x128xf32> to vector<24x128xf32>
    %cst_32 = arith.constant dense<0.000000e+00> : vector<336x128xf32>
    %27 = tpu.matmul %24, %26, %cst_32 {dimension_numbers = #tpu.dot_dimension_numbers<[1], [0], [0], [1], [0, 0, 1, 1], [], []>} : vector<336x24xf32>, vector<24x128xf32>, vector<336x128xf32> -> vector<336x128xf32>
    %28 = arith.addf %22, %27 : vector<336x128xf32>
    %c0_33 = arith.constant 0 : index
    %c0_34 = arith.constant 0 : index
    %29 = vector.load %arg8[%c0_33, %c0_34] : memref<384x128xf32, #tpu.memory_space<vmem>>, vector<336x128xf32>
    tpu.vector_store %arg8[%c0_33, %c0_34], %28 {strides = array<i32>} : memref<384x128xf32, #tpu.memory_space<vmem>>, vector<336x128xf32>,
    %c336 = arith.constant 336 : index
    %c0_35 = arith.constant 0 : index
    %30 = vector.load %arg8[%c336, %c0_35] : memref<384x128xf32, #tpu.memory_space<vmem>>, vector<48x128xf32>
    %c0_36 = arith.constant 0 : index
    %c0_37 = arith.constant 0 : index
    %c0_38 = arith.constant 0 : index
    %31 = vector.load %arg4[%c0_36, %c0_37, %c0_38] : memref<1x48x24xf32, #tpu.memory_space<vmem>>, vector<1x48x24xf32>
    %32 = vector.shape_cast %31 : vector<1x48x24xf32> to vector<48x24xf32>
    %c2_39 = arith.constant 2 : index
    %c0_40 = arith.constant 0 : index
    %c0_41 = arith.constant 0 : index
    %33 = vector.load %arg5[%c2_39, %c0_40, %c0_41] : memref<3x24x128xf32, #tpu.memory_space<vmem>>, vector<1x24x128xf32>
    %34 = vector.shape_cast %33 : vector<1x24x128xf32> to vector<24x128xf32>
    %cst_42 = arith.constant dense<0.000000e+00> : vector<48x128xf32>
    %35 = tpu.matmul %32, %34, %cst_42 {dimension_numbers = #tpu.dot_dimension_numbers<[1], [0], [0], [1], [0, 0, 1, 1], [], []>} : vector<48x24xf32>, vector<24x128xf32>, vector<48x128xf32> -> vector<48x128xf32>
    %36 = arith.addf %30, %35 : vector<48x128xf32>
    %c336_43 = arith.constant 336 : index
    %c0_44 = arith.constant 0 : index
    %37 = vector.load %arg8[%c336_43, %c0_44] : memref<384x128xf32, #tpu.memory_space<vmem>>, vector<48x128xf32>
    tpu.vector_store %arg8[%c336_43, %c0_44], %36 {strides = array<i32>} : memref<384x128xf32, #tpu.memory_space<vmem>>, vector<48x128xf32>,
    %c0_45 = arith.constant 0 : index
    %c0_46 = arith.constant 0 : index
    %38 = vector.load %arg8[%c0_45, %c0_46] : memref<384x128xf32, #tpu.memory_space<vmem>>, vector<384x128xf32>
    %c0_47 = arith.constant 0 : index
    %c0_48 = arith.constant 0 : index
    %39 = vector.load %arg6[%c0_47, %c0_48] : memref<1x128xf32, #tpu.memory_space<vmem>>, vector<1x128xf32>
    %40 = vector.broadcast %39 : vector<1x128xf32> to vector<384x128xf32>
    %41 = arith.addf %38, %40 : vector<384x128xf32>
    %42 = arith.negf %41 : vector<384x128xf32>
    %43 = math.exp %42 : vector<384x128xf32>
    %cst_49 = arith.constant 1.000000e+00 : f32
    %44 = vector.broadcast %cst_49 : f32 to vector<384x128xf32>
    %45 = arith.addf %44, %43 : vector<384x128xf32>
    %46 = arith.divf %44, %45 : vector<384x128xf32>
    %47 = arith.mulf %41, %46 : vector<384x128xf32>
    %c0_50 = arith.constant 0 : index
    %c0_51 = arith.constant 0 : index
    %c0_52 = arith.constant 0 : index
    %48 = vector.load %arg7[%c0_50, %c0_51, %c0_52] : memref<1x384x128xf32, #tpu.memory_space<vmem>>, vector<1x384x128xf32>
    %49 = vector.shape_cast %48 : vector<1x384x128xf32> to vector<384x128xf32>
    %50 = vector.shape_cast %47 : vector<384x128xf32> to vector<1x384x128xf32>
    tpu.vector_store %arg7[%c0_50, %c0_51, %c0_52], %50 {strides = array<i32>} : memref<1x384x128xf32, #tpu.memory_space<vmem>>, vector<1x384x128xf32>,
    return
  }
  func.func @transform_0(%arg0: i32, %arg1: i32, %arg2: i32) -> (i32, i32, i32) {
    %c0_i32 = arith.constant 0 : i32
    %c0_i32_0 = arith.constant 0 : i32
    return %arg0, %arg1, %c0_i32 : i32, i32, i32
  }
  func.func @transform_1(%arg0: i32, %arg1: i32, %arg2: i32) -> (i32, i32, i32) {
    %c1_i32 = arith.constant 1 : i32
    %0 = arith.addi %arg1, %c1_i32 : i32
    %c8_i32 = arith.constant 8 : i32
    %1 = arith.muli %0, %c8_i32 : i32
    %c0_i32 = arith.constant 0 : i32
    %c0_i32_0 = arith.constant 0 : i32
    return %arg0, %1, %c0_i32 : i32, i32, i32
  }
  func.func @transform_2(%arg0: i32, %arg1: i32, %arg2: i32) -> (i32, i32, i32) {
    %c0_i32 = arith.constant 0 : i32
    %c0_i32_0 = arith.constant 0 : i32
    %c0_i32_1 = arith.constant 0 : i32
    return %c0_i32, %c0_i32_0, %arg2 : i32, i32, i32
  }
  func.func @transform_3(%arg0: i32, %arg1: i32, %arg2: i32) -> (i32, i32) {
    %c0_i32 = arith.constant 0 : i32
    %c0_i32_0 = arith.constant 0 : i32
    return %c0_i32, %arg2 : i32, i32
  }
  func.func @transform_4(%arg0: i32, %arg1: i32, %arg2: i32) -> (i32, i32, i32) {
    %c0_i32 = arith.constant 0 : i32
    return %arg0, %arg1, %arg2 : i32, i32, i32
  }
}

</mosaic_0001>

<llo_original>
// kernel: conv2_forward.1
$region0: #{conv2_forward.1}
  #allocation0 [shape = 'u32[]', space=smem, size = 0x4, offset = 0x4, fixed_abs, tag = 'smem constant byte address 0x4 - core index']
  #allocation1 [shape = 'u32[144,128]{1,0:T(1,128)}', space=vmem, size = 0x12000, scoped, tag = 'internal scratch']
  #allocation2 [shape = 'f32[384,128]{1,0:T(8,128)}', space=vmem, size = 0x30000, scoped, tag = 'scratch operand']
  %s0 = inlined_call_operand.vmem [shape: f32[2,432,24], index: 0, kind: input, shape index: {}, may-alias: {0,1}]
  %s1 = inlined_call_operand.vmem [shape: f32[2,432,24], index: 1, kind: input, shape index: {}, may-alias: {0,1}]
  %s2 = inlined_call_operand.vmem [shape: f32[3,24,128], index: 2, kind: input, shape index: {}]
  %s3 = inlined_call_operand.vmem [shape: f32[1,128], index: 3, kind: input, shape index: {}]
  %s4 = inlined_call_operand.vmem [shape: f32[2,384,128], index: 4, kind: output, shape index: {}]
  %s5 = sld [smem:[#allocation0]]
  $region49: #{conv2_forward.1} parent=0
    _
  %s7 = ssub.s32 1, %s5
  %s8 = scalar_select 0, %s7, %s5
  loop: start=0, step=1, limit=4
  $region2: #{conv2_forward.1} parent=0 // loop_pre_header
    _
  $region3: #{conv2_forward.1} parent=0 // loop_header
    %s10 = sphi 0, %s14
    %p11 = scmp.ge.s32.totalorder %s10, 4
    %s17 = sphi 0, %s36
    %s18 = sphi 0, %s32
    %s19 = sphi 0, %s28
    %s20 = sphi 0, %s17
    %s21 = sphi 0, %s18
    %s22 = sphi 0, %s19
    %s23 = sphi 0, %s20
    %s24 = sphi 0, %s21
    %s25 = sphi 0, %s22
    %s41 = sphi 0, %s43
    %s44 = sphi 0, %s41
    %s45 = sphi 0, %s44
    %s61 = sphi 0, %s45
    %s73 = sphi 0, %s75
    %s76 = sphi 0, %s73
    %s77 = sphi 0, %s76
    %s93 = sphi 0, %s77
    %s99 = sphi 0, %s101
    %s102 = sphi 0, %s99
    %s103 = sphi 0, %s102
    %s119 = sphi 0, %s103
    %s125 = sphi 0, %s127
    %s128 = sphi 0, %s125
    %s129 = sphi 0, %s128
    %s145 = sphi 0, %s129
    %s155 = sphi 0, %s157
    %s158 = sphi 0, %s155
    %s159 = sphi 0, %s158
    %s175 = sphi 0, %s159
  $region4: #{conv2_forward.1} parent=0 // loop_header_branch
    %13 = sbr.rel (%p11) target = $region8
  $region5: #{conv2_forward.1} parent=0 // loop_body
    %s15 = ssub.s32 %s10, 1
    %s16 = ssub.s32 %s10, 2
    %s26 = sadd.s32 1, %s19
    %p27 = scmp.ge.s32.totalorder %s26, 1
    %s28 = scalar_select %p27, 0, %s26
    %s29 = sadd.s32 1, %s18
    %s30 = scalar_select %p27, %s29, %s18
    %p31 = scmp.ge.s32.totalorder %s30, 1
    %s32 = scalar_select %p31, 0, %s30
    %s33 = sadd.s32 1, %s17
    %s34 = scalar_select %p31, %s33, %s17
    %p35 = scmp.ge.s32.totalorder %s34, 2
    %s36 = scalar_select %p35, 0, %s34
    %s37 = ssub.s32 %s17, %s36
    %s38 = ssub.s32 %s18, %s32
    %s39 = sor.u32 %s37, %s38
    %p40 = scmp.eq.s32.totalorder %s39, 0
    %s42 = sadd.s32 %s41, 1
    %s43 = scalar_select %p40, %s41, %s42
    %p46 = pneg %p40
    %p47 = scmp.eq.s32.totalorder %s10, 1
    %p48 = por %p46, %p47
    %p49 = scmp.ne.s32.totalorder %s41, %s44
    %p50 = scmp.eq.s32.totalorder %s10, 0
    %p51 = por %p49, %p50
    %p52 = scmp.ne.s32.totalorder %s41, %s44
    %p53 = scmp.eq.s32.totalorder %s15, 1
    %p54 = por %p52, %p53
    %p55 = scmp.ne.s32.totalorder %s44, %s45
    %p56 = scmp.eq.s32.totalorder %s15, 0
    %p57 = por %p55, %p56
    %p58 = scmp.ne.s32.totalorder %s44, %s45
    %p59 = scmp.eq.s32.totalorder %s16, 1
    %p60 = por %p58, %p59
    %p62 = scmp.ne.s32.totalorder %s45, %s61
    %p63 = scmp.eq.s32.totalorder %s16, 0
    %p64 = por %p62, %p63
    %s65 = sadd.s32 %s18, 1
    %s66 = smul.u32 %s65, 8
    %s67 = sadd.s32 %s32, 1
    %s68 = smul.u32 %s67, 8
    %s69 = ssub.s32 %s17, %s36
    %s70 = ssub.s32 %s66, %s68
    %s71 = sor.u32 %s69, %s70
    %p72 = scmp.eq.s32.totalorder %s71, 0
    %s74 = sadd.s32 %s73, 1
    %s75 = scalar_select %p72, %s73, %s74
    %p78 = pneg %p72
    %p79 = scmp.eq.s32.totalorder %s10, 1
    %p80 = por %p78, %p79
    %p81 = scmp.ne.s32.totalorder %s73, %s76
    %p82 = scmp.eq.s32.totalorder %s10, 0
    %p83 = por %p81, %p82
    %p84 = scmp.ne.s32.totalorder %s73, %s76
    %p85 = scmp.eq.s32.totalorder %s15, 1
    %p86 = por %p84, %p85
    %p87 = scmp.ne.s32.totalorder %s76, %s77
    %p88 = scmp.eq.s32.totalorder %s15, 0
    %p89 = por %p87, %p88
    %p90 = scmp.ne.s32.totalorder %s76, %s77
    %p91 = scmp.eq.s32.totalorder %s16, 1
    %p92 = por %p90, %p91
    %p94 = scmp.ne.s32.totalorder %s77, %s93
    %p95 = scmp.eq.s32.totalorder %s16, 0
    %p96 = por %p94, %p95
    %s97 = ssub.s32 %s19, %s28
    %p98 = scmp.eq.s32.totalorder %s97, 0
    %s100 = sadd.s32 %s99, 1
    %s101 = scalar_select %p98, %s99, %s100
    %p104 = pneg %p98
    %p105 = scmp.eq.s32.totalorder %s10, 1
    %p106 = por %p104, %p105
    %p107 = scmp.ne.s32.totalorder %s99, %s102
    %p108 = scmp.eq.s32.totalorder %s10, 0
    %p109 = por %p107, %p108
    %p110 = scmp.ne.s32.totalorder %s99, %s102
    %p111 = scmp.eq.s32.totalorder %s15, 1
    %p112 = por %p110, %p111
    %p113 = scmp.ne.s32.totalorder %s102, %s103
    %p114 = scmp.eq.s32.totalorder %s15, 0
    %p115 = por %p113, %p114
    %p116 = scmp.ne.s32.totalorder %s102, %s103
    %p117 = scmp.eq.s32.totalorder %s16, 1
    %p118 = por %p116, %p117
    %p120 = scmp.ne.s32.totalorder %s103, %s119
    %p121 = scmp.eq.s32.totalorder %s16, 0
    %p122 = por %p120, %p121
    %s123 = ssub.s32 %s19, %s28
    %p124 = scmp.eq.s32.totalorder %s123, 0
    %s126 = sadd.s32 %s125, 1
    %s127 = scalar_select %p124, %s125, %s126
    %p130 = pneg %p124
    %p131 = scmp.eq.s32.totalorder %s10, 1
    %p132 = por %p130, %p131
    %p133 = scmp.ne.s32.totalorder %s125, %s128
    %p134 = scmp.eq.s32.totalorder %s10, 0
    %p135 = por %p133, %p134
    %p136 = scmp.ne.s32.totalorder %s125, %s128
    %p137 = scmp.eq.s32.totalorder %s15, 1
    %p138 = por %p136, %p137
    %p139 = scmp.ne.s32.totalorder %s128, %s129
    %p140 = scmp.eq.s32.totalorder %s15, 0
    %p141 = por %p139, %p140
    %p142 = scmp.ne.s32.totalorder %s128, %s129
    %p143 = scmp.eq.s32.totalorder %s16, 1
    %p144 = por %p142, %p143
    %p146 = scmp.ne.s32.totalorder %s129, %s145
    %p147 = scmp.eq.s32.totalorder %s16, 0
    %p148 = por %p146, %p147
    %s149 = ssub.s32 %s17, %s36
    %s150 = ssub.s32 %s18, %s32
    %s151 = sor.u32 %s149, %s150
    %s152 = ssub.s32 %s19, %s28
    %s153 = sor.u32 %s151, %s152
    %p154 = scmp.eq.s32.totalorder %s153, 0
    %s156 = sadd.s32 %s155, 1
    %s157 = scalar_select %p154, %s155, %s156
    %p160 = pneg %p154
    %p161 = scmp.eq.s32.totalorder %s10, 1
    %p162 = por %p160, %p161
    %p163 = scmp.ne.s32.totalorder %s155, %s158
    %p164 = scmp.eq.s32.totalorder %s10, 0
    %p165 = por %p163, %p164
    %p166 = scmp.ne.s32.totalorder %s155, %s158
    %p167 = scmp.eq.s32.totalorder %s15, 1
    %p168 = por %p166, %p167
    %p169 = scmp.ne.s32.totalorder %s158, %s159
    %p170 = scmp.eq.s32.totalorder %s15, 0
    %p171 = por %p169, %p170
    %p172 = scmp.ne.s32.totalorder %s158, %s159
    %p173 = scmp.eq.s32.totalorder %s16, 1
    %p174 = por %p172, %p173
    %p176 = scmp.ne.s32.totalorder %s159, %s175
    %p177 = scmp.eq.s32.totalorder %s16, 0
    %p178 = por %p176, %p177
    %p179 = scmp.le.s32.totalorder 1, %s10
    %p180 = scmp.lt.s32.totalorder %s10, 3
    %p181 = pnand %p179, %p180
    %p182 = pneg %p181
    // Predicated region
    $region9: #{conv2_forward.1} parent=5 // pred_check
      _
    $region10: #{conv2_forward.1} parent=5 // pred_check_branch
      %184 = sbr.rel (%p181) target = $region12
    $region11: #{conv2_forward.1} parent=5 // pred_region
      %s185 = ssub.s32 %s10, 1
      // Predicated region
      $region13: #{conv2_forward.1} parent=11 // pred_check
        %p186 = pneg %p115
      $region14: #{conv2_forward.1} parent=11 // pred_check_branch
        %188 = sbr.rel (%p186) target = $region16
      $region15: #{conv2_forward.1} parent=11 // pred_region
        %p189 = scmp.lt.s32.totalorder %s22, 0
        %s190 = scalar_select %p189, %s22, 0
        %s191 = smul.addr %s190, 8
        %s192 = scalar_lea.vmem %s2, %s191
      $region16: #{conv2_forward.1} parent=11 // pred_fallthru
        _
      // Predicated region
      $region17: #{conv2_forward.1} parent=11 // pred_check
        %p193 = pneg %p141
      $region18: #{conv2_forward.1} parent=11 // pred_check_branch
        %195 = sbr.rel (%p193) target = $region20
      $region19: #{conv2_forward.1} parent=11 // pred_region
        %p196 = scmp.lt.s32.totalorder %s22, 0
        %s197 = scalar_select %p196, %s22, 0
        %s198 = scalar_lea.vmem %s3, %s197
      $region20: #{conv2_forward.1} parent=11 // pred_fallthru
        _
    $region12: #{conv2_forward.1} parent=5 // pred_fallthru
      _
    %p199 = scmp.lt.s32.totalorder %s10, 2
    // Predicated region
    $region21: #{conv2_forward.1} parent=5 // pred_check
      %p200 = pneg %p199
    $region22: #{conv2_forward.1} parent=5 // pred_check_branch
      %202 = sbr.rel (%p200) target = $region24
    $region23: #{conv2_forward.1} parent=5 // pred_region
      // Predicated region
      $region25: #{conv2_forward.1} parent=23 // pred_check
        %p203 = pneg %p51
      $region26: #{conv2_forward.1} parent=23 // pred_check_branch
        %205 = sbr.rel (%p203) target = $region28
      $region27: #{conv2_forward.1} parent=23 // pred_region
        %s206 = smul.u32 48, %s18
        %s207 = ssub.s32 54, %s206
        %p208 = scmp.lt.s32.totalorder %s207, 48
        %s209 = scalar_select %p208, %s207, 48
        %s210 = smul.u32 128, %s209
        %p211 = scmp.lt.s32.totalorder %s17, 1
        %s212 = scalar_select %p211, %s17, 1
        %p213 = scmp.lt.s32.totalorder %s206, 53
        %s214 = scalar_select %p213, %s206, 53
        %s215 = smul.addr %s212, 54
        %s216 = sadd.s32 %s214, %s215
        %s217 = smul.addr %s216, 8
        %s218 = scalar_lea.vmem %s0, %s217
        %s219 = smul.u32 48, %s18
        %s220 = ssub.s32 54, %s219
        %p221 = scmp.lt.s32.totalorder %s220, 48
        %s222 = scalar_select %p221, %s220, 48
        %s223 = smul.u32 128, %s222
      $region28: #{conv2_forward.1} parent=23 // pred_fallthru
        _
      // Predicated region
      $region29: #{conv2_forward.1} parent=23 // pred_check
        %p224 = pneg %p83
      $region30: #{conv2_forward.1} parent=23 // pred_check_branch
        %226 = sbr.rel (%p224) target = $region32
      $region31: #{conv2_forward.1} parent=23 // pred_region
        %s227 = sadd.s32 %s18, 1
        %s228 = smul.u32 %s227, 8
        %s229 = smul.u32 6, %s228
        %p230 = scmp.lt.s32.totalorder %s17, 1
        %s231 = scalar_select %p230, %s17, 1
        %p232 = scmp.lt.s32.totalorder %s229, 53
        %s233 = scalar_select %p232, %s229, 53
        %s234 = smul.addr %s231, 54
        %s235 = sadd.s32 %s233, %s234
        %s236 = smul.addr %s235, 8
        %s237 = scalar_lea.vmem %s1, %s236
        %s238 = sadd.s32 %s18, 1
        %s239 = smul.u32 %s238, 8
        %s240 = smul.u32 6, %s239
      $region32: #{conv2_forward.1} parent=23 // pred_fallthru
        _
    $region24: #{conv2_forward.1} parent=5 // pred_fallthru
      _
    %p241 = scmp.le.s32.totalorder 1, %s10
    %p242 = scmp.lt.s32.totalorder %s10, 3
    %p243 = pnand %p241, %p242
    %p244 = pneg %p243
    // Predicated region
    $region33: #{conv2_forward.1} parent=5 // pred_check
      _
    $region34: #{conv2_forward.1} parent=5 // pred_check_branch
      %246 = sbr.rel (%p243) target = $region36
    $region35: #{conv2_forward.1} parent=5 // pred_region
      %s247 = ssub.s32 %s10, 1
      %s248 = smul.u32 48, %s21
      %s249 = ssub.s32 54, %s248
      %p250 = scmp.lt.s32.totalorder %s249, 48
      %s251 = scalar_select %p250, %s249, 48
      %s252 = smul.u32 128, %s251
      %p253 = scmp.lt.s32.totalorder %s20, 1
      %s254 = scalar_select %p253, %s20, 1
      %p255 = scmp.lt.s32.totalorder %s248, 53
      %s256 = scalar_select %p255, %s248, 53
      %s257 = smul.addr %s254, 54
      %s258 = sadd.s32 %s256, %s257
      %s259 = smul.addr %s258, 8
      %s260 = scalar_lea.vmem %s0, %s259
      %p261 = pneg %p57
      %p262 = pneg %p54
      %s263 = sadd.s32 %s21, 1
      %s264 = smul.u32 %s263, 8
      %s265 = smul.u32 6, %s264
      %p266 = scmp.lt.s32.totalorder %s20, 1
      %s267 = scalar_select %p266, %s20, 1
      %p268 = scmp.lt.s32.totalorder %s265, 53
      %s269 = scalar_select %p268, %s265, 53
      %s270 = smul.addr %s267, 54
      %s271 = sadd.s32 %s269, %s270
      %s272 = smul.addr %s271, 8
      %s273 = scalar_lea.vmem %s1, %s272
      %p274 = pneg %p89
      %p275 = pneg %p86
      %p276 = scmp.lt.s32.totalorder %s22, 0
      %s277 = scalar_select %p276, %s22, 0
      %s278 = smul.addr %s277, 8
      %s279 = scalar_lea.vmem %s2, %s278
      %p280 = pneg %p115
      %p281 = pneg %p112
      %p282 = scmp.lt.s32.totalorder %s22, 0
      %s283 = scalar_select %p282, %s22, 0
      %s284 = scalar_lea.vmem %s3, %s283
      %p285 = pneg %p141
      %p286 = pneg %p138
      %p287 = pneg %p171
      %p288 = pneg %p168
      %s289 = smul.u32 48, %s21
      %p290 = scmp.lt.s32.totalorder %s20, 1
      %s291 = scalar_select %p290, %s20, 1
      %p292 = scmp.lt.s32.totalorder %s289, 47
      %s293 = scalar_select %p292, %s289, 47
      %p294 = scmp.lt.s32.totalorder %s22, 0
      %s295 = scalar_select %p294, %s22, 0
      %s296 = sadd.s32 %s295, %s293
      %s297 = smul.addr %s291, 48
      %s298 = sadd.s32 %s296, %s297
      %s299 = smul.addr %s298, 8
      %s300 = scalar_lea.vmem %s4, %s299
      %s301 = smul.u32 48, %s21
      %s302 = ssub.s32 54, %s301
      %p303 = scmp.lt.s32.totalorder %s302, 48
      %s304 = scalar_select %p303, %s302, 48
      %s305 = smul.u32 128, %s304
      %p306 = scmp.lt.s32.totalorder %s20, 1
      %s307 = scalar_select %p306, %s20, 1
      %p308 = scmp.lt.s32.totalorder %s301, 53
      %s309 = scalar_select %p308, %s301, 53
      %s310 = smul.addr %s307, 54
      %s311 = sadd.s32 %s309, %s310
      %s312 = smul.addr %s311, 8
      %s313 = scalar_lea.vmem %s0, %s312
      %s314 = smul.u32 48, %s21
      %s315 = ssub.s32 54, %s314
      %p316 = scmp.lt.s32.totalorder %s315, 48
      %s317 = scalar_select %p316, %s315, 48
      %s318 = smul.u32 128, %s317
      %s319 = sadd.s32 %s21, 1
      %s320 = smul.u32 %s319, 8
      %s321 = smul.u32 6, %s320
      %p322 = scmp.lt.s32.totalorder %s20, 1
      %s323 = scalar_select %p322, %s20, 1
      %p324 = scmp.lt.s32.totalorder %s321, 53
      %s325 = scalar_select %p324, %s321, 53
      %s326 = smul.addr %s323, 54
      %s327 = sadd.s32 %s325, %s326
      %s328 = smul.addr %s327, 8
      %s329 = scalar_lea.vmem %s1, %s328
      %s330 = sadd.s32 %s21, 1
      %s331 = smul.u32 %s330, 8
      %s332 = smul.u32 6, %s331
      %p333 = scmp.lt.s32.totalorder %s22, 0
      %s334 = scalar_select %p333, %s22, 0
      %s335 = smul.addr %s334, 8
      %s336 = scalar_lea.vmem %s2, %s335
      %p337 = scmp.lt.s32.totalorder %s22, 0
      %s338 = scalar_select %p337, %s22, 0
      %s339 = scalar_lea.vmem %s3, %s338
      %s340 = smul.u32 48, %s21
      %p341 = scmp.lt.s32.totalorder %s20, 1
      %s342 = scalar_select %p341, %s20, 1
      %p343 = scmp.lt.s32.totalorder %s340, 47
      %s344 = scalar_select %p343, %s340, 47
      %p345 = scmp.lt.s32.totalorder %s22, 0
      %s346 = scalar_select %p345, %s22, 0
      %s347 = sadd.s32 %s346, %s344
      %s348 = smul.addr %s342, 48
      %s349 = sadd.s32 %s347, %s348
      %s350 = smul.addr %s349, 8
      %s351 = scalar_lea.vmem %s4, %s350
      %s352 = smul.u32 48, %s21
      %v353 = vld [vmem:[%s313] sm:$0xff]
      %v354 = vld [vmem:[%s313 + $0x8] sm:$0xff]
      %v355 = vld [vmem:[%s313 + $0x10] sm:$0xff]
      %v356 = vld [vmem:[%s313 + $0x18] sm:$0xff]
      %v357 = vld [vmem:[%s313 + $0x20] sm:$0xff]
      %v358 = vld [vmem:[%s313 + $0x28] sm:$0xff]
      %v359 = vld [vmem:[%s313 + $0x30] sm:$0xff]
      %v360 = vld [vmem:[%s313 + $0x38] sm:$0xff]
      %v361 = vld [vmem:[%s313 + $0x40] sm:$0xff]
      %v362 = vld [vmem:[%s313 + $0x48] sm:$0xff]
      %v363 = vld [vmem:[%s313 + $0x50] sm:$0xff]
      %v364 = vld [vmem:[%s313 + $0x58] sm:$0xff]
      %v365 = vld [vmem:[%s313 + $0x60] sm:$0xff]
      %v366 = vld [vmem:[%s313 + $0x68] sm:$0xff]
      %v367 = vld [vmem:[%s313 + $0x70] sm:$0xff]
      %v368 = vld [vmem:[%s313 + $0x78] sm:$0xff]
      %v369 = vld [vmem:[%s313 + $0x80] sm:$0xff]
      %v370 = vld [vmem:[%s313 + $0x88] sm:$0xff]
      %v371 = vld [vmem:[%s313 + $0x90] sm:$0xff]
      %v372 = vld [vmem:[%s313 + $0x98] sm:$0xff]
      %v373 = vld [vmem:[%s313 + $0xa0] sm:$0xff]
      %v374 = vld [vmem:[%s313 + $0xa8] sm:$0xff]
      %v375 = vld [vmem:[%s313 + $0xb0] sm:$0xff]
      %v376 = vld [vmem:[%s313 + $0xb8] sm:$0xff]
      %v377 = vld [vmem:[%s313 + $0xc0] sm:$0xff]
      %v378 = vld [vmem:[%s313 + $0xc8] sm:$0xff]
      %v379 = vld [vmem:[%s313 + $0xd0] sm:$0xff]
      %v380 = vld [vmem:[%s313 + $0xd8] sm:$0xff]
      %v381 = vld [vmem:[%s313 + $0xe0] sm:$0xff]
      %v382 = vld [vmem:[%s313 + $0xe8] sm:$0xff]
      %v383 = vld [vmem:[%s313 + $0xf0] sm:$0xff]
      %v384 = vld [vmem:[%s313 + $0xf8] sm:$0xff]
      %v385 = vld [vmem:[%s313 + $0x100] sm:$0xff]
      %v386 = vld [vmem:[%s313 + $0x108] sm:$0xff]
      %v387 = vld [vmem:[%s313 + $0x110] sm:$0xff]
      %v388 = vld [vmem:[%s313 + $0x118] sm:$0xff]
      %v389 = vld [vmem:[%s313 + $0x120] sm:$0xff]
      %v390 = vld [vmem:[%s313 + $0x128] sm:$0xff]
      %v391 = vld [vmem:[%s313 + $0x130] sm:$0xff]
      %v392 = vld [vmem:[%s313 + $0x138] sm:$0xff]
      %v393 = vld [vmem:[%s313 + $0x140] sm:$0xff]
      %v394 = vld [vmem:[%s313 + $0x148] sm:$0xff]
      %v395 = vld [vmem:[%s313 + $0x150] sm:$0xff]
      %v396 = vld [vmem:[%s313 + $0x158] sm:$0xff]
      %v397 = vld [vmem:[%s313 + $0x160] sm:$0xff]
      %v398 = vld [vmem:[%s313 + $0x168] sm:$0xff]
      %v399 = vld [vmem:[%s313 + $0x170] sm:$0xff]
      %v400 = vld [vmem:[%s313 + $0x178] sm:$0xff]
      %v401 = vld [vmem:[%s336] sm:$0xff]
      %v402 = vld [vmem:[%s336 + $0x8] sm:$0xff]
      %v403 = vld [vmem:[%s336 + $0x10] sm:$0xff]
      %vm404 = vcmask 195584
      %v406 = vsel %vm404, %v353, 0
      %v409 = vsel %vm404, %v354, 0
      %v412 = vsel %vm404, %v355, 0
      %v415 = vsel %vm404, %v356, 0
      %v418 = vsel %vm404, %v357, 0
      %v421 = vsel %vm404, %v358, 0
      %v424 = vsel %vm404, %v359, 0
      %v427 = vsel %vm404, %v360, 0
      %v430 = vsel %vm404, %v361, 0
      %v433 = vsel %vm404, %v362, 0
      %v436 = vsel %vm404, %v363, 0
      %v439 = vsel %vm404, %v364, 0
      %v442 = vsel %vm404, %v365, 0
      %v445 = vsel %vm404, %v366, 0
      %v448 = vsel %vm404, %v367, 0
      %v451 = vsel %vm404, %v368, 0
      %v454 = vsel %vm404, %v369, 0
      %v457 = vsel %vm404, %v370, 0
      %v460 = vsel %vm404, %v371, 0
      %v463 = vsel %vm404, %v372, 0
      %v466 = vsel %vm404, %v373, 0
      %v469 = vsel %vm404, %v374, 0
      %v472 = vsel %vm404, %v375, 0
      %v475 = vsel %vm404, %v376, 0
      %v478 = vsel %vm404, %v377, 0
      %v481 = vsel %vm404, %v378, 0
      %v484 = vsel %vm404, %v379, 0
      %v487 = vsel %vm404, %v380, 0
      %v490 = vsel %vm404, %v381, 0
      %v493 = vsel %vm404, %v382, 0
      %v496 = vsel %vm404, %v383, 0
      %v499 = vsel %vm404, %v384, 0
      %v502 = vsel %vm404, %v385, 0
      %v505 = vsel %vm404, %v386, 0
      %v508 = vsel %vm404, %v387, 0
      %v511 = vsel %vm404, %v388, 0
      %v514 = vsel %vm404, %v389, 0
      %v517 = vsel %vm404, %v390, 0
      %v520 = vsel %vm404, %v391, 0
      %v523 = vsel %vm404, %v392, 0
      %v526 = vsel %vm404, %v393, 0
      %v529 = vsel %vm404, %v394, 0
      %v532 = vsel %vm404, %v395, 0
      %v535 = vsel %vm404, %v396, 0
      %v538 = vsel %vm404, %v397, 0
      %v541 = vsel %vm404, %v398, 0
      %v544 = vsel %vm404, %v399, 0
      %v547 = vsel %vm404, %v400, 0
      %549 = vmatprep.subr.mxu0 0.0
      %550 = vmatpush1.msra.mxu0 %v401
      %551 = vmatprep.subr.mxu0 0.0
      %552 = vmatpush1.msra.mxu0 %v402
      %553 = vmatprep.subr.mxu0 0.0
      %554 = vmatpush1.msra.mxu0 %v403
      %555 = vmatprep.subr.mxu0 0.0
      %556 = vmatpush1.msra.mxu0 0.0
      %557 = vmatprep.subr.mxu0 0.0
      %558 = vmatpush1.msra.mxu0 0.0
      %559 = vmatprep.subr.mxu0 0.0
      %560 = vmatpush1.msra.mxu0 0.0
      %561 = vmatprep.subr.mxu0 0.0
      %562 = vmatpush1.msra.mxu0 0.0
      %563 = vmatprep.subr.mxu0 0.0
      %564 = vmatpush1.msra.mxu0 0.0
      %565 = vmatprep.subr.mxu0 0.0
      %566 = vmatpush1.msra.mxu0 0.0
      %567 = vmatprep.subr.mxu0 0.0
      %568 = vmatpush1.msra.mxu0 0.0
      %569 = vmatprep.subr.mxu0 0.0
      %570 = vmatpush1.msra.mxu0 0.0
      %571 = vmatprep.subr.mxu0 0.0
      %572 = vmatpush1.msra.mxu0 0.0
      %573 = vmatprep.subr.mxu0 0.0
      %574 = vmatpush1.msra.mxu0 0.0
      %575 = vmatprep.subr.mxu0 0.0
      %576 = vmatpush1.msra.mxu0 0.0
      %577 = vmatprep.subr.mxu0 0.0
      %578 = vmatpush1.msra.mxu0 0.0
      %579 = vmatprep.subr.mxu0 0.0
      %580 = vmatpush1.msra.mxu0 0.0
      %581 = vmatprep.subr.mxu0 0.0
      %582 = vmatpush1.msra.mxu0 0.0
      %583 = vmatprep.subr.mxu0 0.0
      %584 = vmatpush1.msra.mxu0 0.0
      %585 = vmatprep.subr.mxu0 0.0
      %586 = vmatpush1.msra.mxu0 0.0
      %587 = vmatprep.subr.mxu0 0.0
      %588 = vmatpush1.msra.mxu0 0.0
      %589 = vmatprep.subr.mxu0 0.0
      %590 = vmatpush1.msra.mxu0 0.0
      %591 = vmatprep.subr.mxu0 0.0
      %592 = vmatpush1.msra.mxu0 0.0
      %593 = vmatprep.subr.mxu0 0.0
      %594 = vmatpush1.msra.mxu0 0.0
      %595 = vmatprep.subr.mxu0 0.0
      %596 = vmatpush1.msra.mxu0 0.0
      %597 = vmatprep.subr.mxu0 0.0
      %598 = vmatpush1.msra.mxu0 0.0
      %599 = vmatprep.subr.mxu0 0.0
      %600 = vmatpush1.msra.mxu0 0.0
      %601 = vmatprep.subr.mxu0 0.0
      %602 = vmatpush1.msra.mxu0 0.0
      %603 = vmatprep.subr.mxu0 0.0
      %604 = vmatpush1.msra.mxu0 0.0
      %605 = vmatprep.subr.mxu0 0.0
      %606 = vmatpush1.msra.mxu0 0.0
      %607 = vmatprep.subr.mxu0 0.0
      %608 = vmatpush1.msra.mxu0 0.0
      %609 = vmatprep.subr.mxu0 0.0
      %610 = vmatpush1.msra.mxu0 0.0
      %611 = vmatprep.subr.mxu0 0.0
      %612 = vmatpush1.msra.mxu0 0.0
      %613 = vmatprep.mubr.f32.mxu0 0.0
      %614 = vmatmul.mubr.f32.gmra.mrb[0].mxu0 %v406
      %v615 = vpop.f32.mrb[0].mxu0
      %v616 = vadd.f32 0.0, %v615
      %v617 = vpop.f32.mrb[0].mxu0
      %618 = vmatprep.mubr.f32.mxu0 0.0
      %619 = vmatmul.mubr.f32.gmra.mrb[0].mxu0 %v409
      %v620 = vpop.f32.mrb[0].mxu0
      %v621 = vadd.f32 0.0, %v620
      %v622 = vpop.f32.mrb[0].mxu0
      %623 = vmatprep.mubr.f32.mxu0 0.0
      %624 = vmatmul.mubr.f32.gmra.mrb[0].mxu0 %v412
      %v625 = vpop.f32.mrb[0].mxu0
      %v626 = vadd.f32 0.0, %v625
      %v627 = vpop.f32.mrb[0].mxu0
      %628 = vmatprep.mubr.f32.mxu0 0.0
      %629 = vmatmul.mubr.f32.gmra.mrb[0].mxu0 %v415
      %v630 = vpop.f32.mrb[0].mxu0
      %v631 = vadd.f32 0.0, %v630
      %v632 = vpop.f32.mrb[0].mxu0
      %633 = vmatprep.mubr.f32.mxu0 0.0
      %634 = vmatmul.mubr.f32.gmra.mrb[0].mxu0 %v418
      %v635 = vpop.f32.mrb[0].mxu0
      %v636 = vadd.f32 0.0, %v635
      %v637 = vpop.f32.mrb[0].mxu0
      %638 = vmatprep.mubr.f32.mxu0 0.0
      %639 = vmatmul.mubr.f32.gmra.mrb[0].mxu0 %v421
      %v640 = vpop.f32.mrb[0].mxu0
      %v641 = vadd.f32 0.0, %v640
      %v642 = vpop.f32.mrb[0].mxu0
      %643 = vmatprep.mubr.f32.mxu0 0.0
      %644 = vmatmul.mubr.f32.gmra.mrb[0].mxu0 %v424
      %v645 = vpop.f32.mrb[0].mxu0
      %v646 = vadd.f32 0.0, %v645
      %v647 = vpop.f32.mrb[0].mxu0
      %648 = vmatprep.mubr.f32.mxu0 0.0
      %649 = vmatmul.mubr.f32.gmra.mrb[0].mxu0 %v427
      %v650 = vpop.f32.mrb[0].mxu0
      %v651 = vadd.f32 0.0, %v650
      %v652 = vpop.f32.mrb[0].mxu0
      %653 = vmatprep.mubr.f32.mxu0 0.0
      %654 = vmatmul.mubr.f32.gmra.mrb[0].mxu0 %v430
      %v655 = vpop.f32.mrb[0].mxu0
      %v656 = vadd.f32 0.0, %v655
      %v657 = vpop.f32.mrb[0].mxu0
      %658 = vmatprep.mubr.f32.mxu0 0.0
      %659 = vmatmul.mubr.f32.gmra.mrb[0].mxu0 %v433
      %v660 = vpop.f32.mrb[0].mxu0
      %v661 = vadd.f32 0.0, %v660
      %v662 = vpop.f32.mrb[0].mxu0
      %663 = vmatprep.mubr.f32.mxu0 0.0
      %664 = vmatmul.mubr.f32.gmra.mrb[0].mxu0 %v436
      %v665 = vpop.f32.mrb[0].mxu0
      %v666 = vadd.f32 0.0, %v665
      %v667 = vpop.f32.mrb[0].mxu0
      %668 = vmatprep.mubr.f32.mxu0 0.0
      %669 = vmatmul.mubr.f32.gmra.mrb[0].mxu0 %v439
      %v670 = vpop.f32.mrb[0].mxu0
      %v671 = vadd.f32 0.0, %v670
      %v672 = vpop.f32.mrb[0].mxu0
      %673 = vmatprep.mubr.f32.mxu0 0.0
      %674 = vmatmul.mubr.f32.gmra.mrb[0].mxu0 %v442
      %v675 = vpop.f32.mrb[0].mxu0
      %v676 = vadd.f32 0.0, %v675
      %v677 = vpop.f32.mrb[0].mxu0
      %678 = vmatprep.mubr.f32.mxu0 0.0
      %679 = vmatmul.mubr.f32.gmra.mrb[0].mxu0 %v445
      %v680 = vpop.f32.mrb[0].mxu0
      %v681 = vadd.f32 0.0, %v680
      %v682 = vpop.f32.mrb[0].mxu0
      %683 = vmatprep.mubr.f32.mxu0 0.0
      %684 = vmatmul.mubr.f32.gmra.mrb[0].mxu0 %v448
      %v685 = vpop.f32.mrb[0].mxu0
      %v686 = vadd.f32 0.0, %v685
      %v687 = vpop.f32.mrb[0].mxu0
      %688 = vmatprep.mubr.f32.mxu0 0.0
      %689 = vmatmul.mubr.f32.gmra.mrb[0].mxu0 %v451
      %v690 = vpop.f32.mrb[0].mxu0
      %v691 = vadd.f32 0.0, %v690
      %v692 = vpop.f32.mrb[0].mxu0
      %693 = vmatprep.mubr.f32.mxu0 0.0
      %694 = vmatmul.mubr.f32.gmra.mrb[0].mxu0 %v454
      %v695 = vpop.f32.mrb[0].mxu0
      %v696 = vadd.f32 0.0, %v695
      %v697 = vpop.f32.mrb[0].mxu0
      %698 = vmatprep.mubr.f32.mxu0 0.0
      %699 = vmatmul.mubr.f32.gmra.mrb[0].mxu0 %v457
      %v700 = vpop.f32.mrb[0].mxu0
      %v701 = vadd.f32 0.0, %v700
      %v702 = vpop.f32.mrb[0].mxu0
      %703 = vmatprep.mubr.f32.mxu0 0.0
      %704 = vmatmul.mubr.f32.gmra.mrb[0].mxu0 %v460
      %v705 = vpop.f32.mrb[0].mxu0
      %v706 = vadd.f32 0.0, %v705
      %v707 = vpop.f32.mrb[0].mxu0
      %708 = vmatprep.mubr.f32.mxu0 0.0
      %709 = vmatmul.mubr.f32.gmra.mrb[0].mxu0 %v463
      %v710 = vpop.f32.mrb[0].mxu0
      %v711 = vadd.f32 0.0, %v710
      %v712 = vpop.f32.mrb[0].mxu0
      %713 = vmatprep.mubr.f32.mxu0 0.0
      %714 = vmatmul.mubr.f32.gmra.mrb[0].mxu0 %v466
      %v715 = vpop.f32.mrb[0].mxu0
      %v716 = vadd.f32 0.0, %v715
      %v717 = vpop.f32.mrb[0].mxu0
      %718 = vmatprep.mubr.f32.mxu0 0.0
      %719 = vmatmul.mubr.f32.gmra.mrb[0].mxu0 %v469
      %v720 = vpop.f32.mrb[0].mxu0
      %v721 = vadd.f32 0.0, %v720
      %v722 = vpop.f32.mrb[0].mxu0
      %723 = vmatprep.mubr.f32.mxu0 0.0
      %724 = vmatmul.mubr.f32.gmra.mrb[0].mxu0 %v472
      %v725 = vpop.f32.mrb[0].mxu0
      %v726 = vadd.f32 0.0, %v725
      %v727 = vpop.f32.mrb[0].mxu0
      %728 = vmatprep.mubr.f32.mxu0 0.0
      %729 = vmatmul.mubr.f32.gmra.mrb[0].mxu0 %v475
      %v730 = vpop.f32.mrb[0].mxu0
      %v731 = vadd.f32 0.0, %v730
      %v732 = vpop.f32.mrb[0].mxu0
      %733 = vmatprep.mubr.f32.mxu0 0.0
      %734 = vmatmul.mubr.f32.gmra.mrb[0].mxu0 %v478
      %v735 = vpop.f32.mrb[0].mxu0
      %v736 = vadd.f32 0.0, %v735
      %v737 = vpop.f32.mrb[0].mxu0
      %738 = vmatprep.mubr.f32.mxu0 0.0
      %739 = vmatmul.mubr.f32.gmra.mrb[0].mxu0 %v481
      %v740 = vpop.f32.mrb[0].mxu0
      %v741 = vadd.f32 0.0, %v740
      %v742 = vpop.f32.mrb[0].mxu0
      %743 = vmatprep.mubr.f32.mxu0 0.0
      %744 = vmatmul.mubr.f32.gmra.mrb[0].mxu0 %v484
      %v745 = vpop.f32.mrb[0].mxu0
      %v746 = vadd.f32 0.0, %v745
      %v747 = vpop.f32.mrb[0].mxu0
      %748 = vmatprep.mubr.f32.mxu0 0.0
      %749 = vmatmul.mubr.f32.gmra.mrb[0].mxu0 %v487
      %v750 = vpop.f32.mrb[0].mxu0
      %v751 = vadd.f32 0.0, %v750
      %v752 = vpop.f32.mrb[0].mxu0
      %753 = vmatprep.mubr.f32.mxu0 0.0
      %754 = vmatmul.mubr.f32.gmra.mrb[0].mxu0 %v490
      %v755 = vpop.f32.mrb[0].mxu0
      %v756 = vadd.f32 0.0, %v755
      %v757 = vpop.f32.mrb[0].mxu0
      %758 = vmatprep.mubr.f32.mxu0 0.0
      %759 = vmatmul.mubr.f32.gmra.mrb[0].mxu0 %v493
      %v760 = vpop.f32.mrb[0].mxu0
      %v761 = vadd.f32 0.0, %v760
      %v762 = vpop.f32.mrb[0].mxu0
      %763 = vmatprep.mubr.f32.mxu0 0.0
      %764 = vmatmul.mubr.f32.gmra.mrb[0].mxu0 %v496
      %v765 = vpop.f32.mrb[0].mxu0
      %v766 = vadd.f32 0.0, %v765
      %v767 = vpop.f32.mrb[0].mxu0
      %768 = vmatprep.mubr.f32.mxu0 0.0
      %769 = vmatmul.mubr.f32.gmra.mrb[0].mxu0 %v499
      %v770 = vpop.f32.mrb[0].mxu0
      %v771 = vadd.f32 0.0, %v770
      %v772 = vpop.f32.mrb[0].mxu0
      %773 = vmatprep.mubr.f32.mxu0 0.0
      %774 = vmatmul.mubr.f32.gmra.mrb[0].mxu0 %v502
      %v775 = vpop.f32.mrb[0].mxu0
      %v776 = vadd.f32 0.0, %v775
      %v777 = vpop.f32.mrb[0].mxu0
      %778 = vmatprep.mubr.f32.mxu0 0.0
      %779 = vmatmul.mubr.f32.gmra.mrb[0].mxu0 %v505
      %v780 = vpop.f32.mrb[0].mxu0
      %v781 = vadd.f32 0.0, %v780
      %v782 = vpop.f32.mrb[0].mxu0
      %783 = vmatprep.mubr.f32.mxu0 0.0
      %784 = vmatmul.mubr.f32.gmra.mrb[0].mxu0 %v508
      %v785 = vpop.f32.mrb[0].mxu0
      %v786 = vadd.f32 0.0, %v785
      %v787 = vpop.f32.mrb[0].mxu0
      %788 = vmatprep.mubr.f32.mxu0 0.0
      %789 = vmatmul.mubr.f32.gmra.mrb[0].mxu0 %v511
      %v790 = vpop.f32.mrb[0].mxu0
      %v791 = vadd.f32 0.0, %v790
      %v792 = vpop.f32.mrb[0].mxu0
      %793 = vmatprep.mubr.f32.mxu0 0.0
      %794 = vmatmul.mubr.f32.gmra.mrb[0].mxu0 %v514
      %v795 = vpop.f32.mrb[0].mxu0
      %v796 = vadd.f32 0.0, %v795
      %v797 = vpop.f32.mrb[0].mxu0
      %798 = vmatprep.mubr.f32.mxu0 0.0
      %799 = vmatmul.mubr.f32.gmra.mrb[0].mxu0 %v517
      %v800 = vpop.f32.mrb[0].mxu0
      %v801 = vadd.f32 0.0, %v800
      %v802 = vpop.f32.mrb[0].mxu0
      %803 = vmatprep.mubr.f32.mxu0 0.0
      %804 = vmatmul.mubr.f32.gmra.mrb[0].mxu0 %v520
      %v805 = vpop.f32.mrb[0].mxu0
      %v806 = vadd.f32 0.0, %v805
      %v807 = vpop.f32.mrb[0].mxu0
      %808 = vmatprep.mubr.f32.mxu0 0.0
      %809 = vmatmul.mubr.f32.gmra.mrb[0].mxu0 %v523
      %v810 = vpop.f32.mrb[0].mxu0
      %v811 = vadd.f32 0.0, %v810
      %v812 = vpop.f32.mrb[0].mxu0
      %813 = vmatprep.mubr.f32.mxu0 0.0
      %814 = vmatmul.mubr.f32.gmra.mrb[0].mxu0 %v526
      %v815 = vpop.f32.mrb[0].mxu0
      %v816 = vadd.f32 0.0, %v815
      %v817 = vpop.f32.mrb[0].mxu0
      %818 = vmatprep.mubr.f32.mxu0 0.0
      %819 = vmatmul.mubr.f32.gmra.mrb[0].mxu0 %v529
      %v820 = vpop.f32.mrb[0].mxu0
      %v821 = vadd.f32 0.0, %v820
      %v822 = vpop.f32.mrb[0].mxu0
      %823 = vmatprep.mubr.f32.mxu0 0.0
      %824 = vmatmul.mubr.f32.gmra.mrb[0].mxu0 %v532
      %v825 = vpop.f32.mrb[0].mxu0
      %v826 = vadd.f32 0.0, %v825
      %v827 = vpop.f32.mrb[0].mxu0
      %828 = vmatprep.mubr.f32.mxu0 0.0
      %829 = vmatmul.mubr.f32.gmra.mrb[0].mxu0 %v535
      %v830 = vpop.f32.mrb[0].mxu0
      %v831 = vadd.f32 0.0, %v830
      %v832 = vpop.f32.mrb[0].mxu0
      %833 = vmatprep.mubr.f32.mxu0 0.0
      %834 = vmatmul.mubr.f32.gmra.mrb[0].mxu0 %v538
      %v835 = vpop.f32.mrb[0].mxu0
      %v836 = vadd.f32 0.0, %v835
      %v837 = vpop.f32.mrb[0].mxu0
      %838 = vmatprep.mubr.f32.mxu0 0.0
      %839 = vmatmul.mubr.f32.gmra.mrb[0].mxu0 %v541
      %v840 = vpop.f32.mrb[0].mxu0
      %v841 = vadd.f32 0.0, %v840
      %v842 = vpop.f32.mrb[0].mxu0
      %843 = vmatprep.mubr.f32.mxu0 0.0
      %844 = vmatmul.mubr.f32.gmra.mrb[0].mxu0 %v544
      %v845 = vpop.f32.mrb[0].mxu0
      %v846 = vadd.f32 0.0, %v845
      %v847 = vpop.f32.mrb[0].mxu0
      %848 = vmatprep.mubr.f32.mxu0 0.0
      %849 = vmatmul.mubr.f32.gmra.mrb[0].mxu0 %v547
      %v850 = vpop.f32.mrb[0].mxu0
      %v851 = vadd.f32 0.0, %v850
      %v852 = vpop.f32.mrb[0].mxu0
      %853 = vdwg.mxu0
      %854 = vst [vmem:[#allocation2] sm:$0xff] %v616
      %855 = vst [vmem:[#allocation2 + $0x8] sm:$0xff] %v621
      %856 = vst [vmem:[#allocation2 + $0x10] sm:$0xff] %v626
      %857 = vst [vmem:[#allocation2 + $0x18] sm:$0xff] %v631
      %858 = vst [vmem:[#allocation2 + $0x20] sm:$0xff] %v636
      %859 = vst [vmem:[#allocation2 + $0x28] sm:$0xff] %v641
      %860 = vst [vmem:[#allocation2 + $0x30] sm:$0xff] %v646
      %861 = vst [vmem:[#allocation2 + $0x38] sm:$0xff] %v651
      %862 = vst [vmem:[#allocation2 + $0x40] sm:$0xff] %v656
      %863 = vst [vmem:[#allocation2 + $0x48] sm:$0xff] %v661
      %864 = vst [vmem:[#allocation2 + $0x50] sm:$0xff] %v666
      %865 = vst [vmem:[#allocation2 + $0x58] sm:$0xff] %v671
      %866 = vst [vmem:[#allocation2 + $0x60] sm:$0xff] %v676
      %867 = vst [vmem:[#allocation2 + $0x68] sm:$0xff] %v681
      %868 = vst [vmem:[#allocation2 + $0x70] sm:$0xff] %v686
      %869 = vst [vmem:[#allocation2 + $0x78] sm:$0xff] %v691
      %870 = vst [vmem:[#allocation2 + $0x80] sm:$0xff] %v696
      %871 = vst [vmem:[#allocation2 + $0x88] sm:$0xff] %v701
      %872 = vst [vmem:[#allocation2 + $0x90] sm:$0xff] %v706
      %873 = vst [vmem:[#allocation2 + $0x98] sm:$0xff] %v711
      %874 = vst [vmem:[#allocation2 + $0xa0] sm:$0xff] %v716
      %875 = vst [vmem:[#allocation2 + $0xa8] sm:$0xff] %v721
      %876 = vst [vmem:[#allocation2 + $0xb0] sm:$0xff] %v726
      %877 = vst [vmem:[#allocation2 + $0xb8] sm:$0xff] %v731
      %878 = vst [vmem:[#allocation2 + $0xc0] sm:$0xff] %v736
      %879 = vst [vmem:[#allocation2 + $0xc8] sm:$0xff] %v741
      %880 = vst [vmem:[#allocation2 + $0xd0] sm:$0xff] %v746
      %881 = vst [vmem:[#allocation2 + $0xd8] sm:$0xff] %v751
      %882 = vst [vmem:[#allocation2 + $0xe0] sm:$0xff] %v756
      %883 = vst [vmem:[#allocation2 + $0xe8] sm:$0xff] %v761
      %884 = vst [vmem:[#allocation2 + $0xf0] sm:$0xff] %v766
      %885 = vst [vmem:[#allocation2 + $0xf8] sm:$0xff] %v771
      %886 = vst [vmem:[#allocation2 + $0x100] sm:$0xff] %v776
      %887 = vst [vmem:[#allocation2 + $0x108] sm:$0xff] %v781
      %888 = vst [vmem:[#allocation2 + $0x110] sm:$0xff] %v786
      %889 = vst [vmem:[#allocation2 + $0x118] sm:$0xff] %v791
      %890 = vst [vmem:[#allocation2 + $0x120] sm:$0xff] %v796
      %891 = vst [vmem:[#allocation2 + $0x128] sm:$0xff] %v801
      %892 = vst [vmem:[#allocation2 + $0x130] sm:$0xff] %v806
      %893 = vst [vmem:[#allocation2 + $0x138] sm:$0xff] %v811
      %894 = vst [vmem:[#allocation2 + $0x140] sm:$0xff] %v816
      %895 = vst [vmem:[#allocation2 + $0x148] sm:$0xff] %v821
      %896 = vst [vmem:[#allocation2 + $0x150] sm:$0xff] %v826
      %897 = vst [vmem:[#allocation2 + $0x158] sm:$0xff] %v831
      %898 = vst [vmem:[#allocation2 + $0x160] sm:$0xff] %v836
      %899 = vst [vmem:[#allocation2 + $0x168] sm:$0xff] %v841
      %900 = vst [vmem:[#allocation2 + $0x170] sm:$0xff] %v846
      %901 = vst [vmem:[#allocation2 + $0x178] sm:$0xff] %v851
      %v902 = vld [vmem:[#allocation2] sm:$0xff]
      %v903 = vld [vmem:[#allocation2 + $0x8] sm:$0xff]
      %v904 = vld [vmem:[#allocation2 + $0x10] sm:$0xff]
      %v905 = vld [vmem:[#allocation2 + $0x18] sm:$0xff]
      %v906 = vld [vmem:[#allocation2 + $0x20] sm:$0xff]
      %v907 = vld [vmem:[#allocation2 + $0x28] sm:$0xff]
      %v908 = vld [vmem:[#allocation2 + $0x30] sm:$0xff]
      %v909 = vld [vmem:[#allocation2 + $0x38] sm:$0xff]
      %v910 = vld [vmem:[#allocation2 + $0x40] sm:$0xff]
      %v911 = vld [vmem:[#allocation2 + $0x48] sm:$0xff]
      %v912 = vld [vmem:[#allocation2 + $0x50] sm:$0xff]
      %v913 = vld [vmem:[#allocation2 + $0x58] sm:$0xff]
      %v914 = vld [vmem:[#allocation2 + $0x60] sm:$0xff]
      %v915 = vld [vmem:[#allocation2 + $0x68] sm:$0xff]
      %v916 = vld [vmem:[#allocation2 + $0x70] sm:$0xff]
      %v917 = vld [vmem:[#allocation2 + $0x78] sm:$0xff]
      %v918 = vld [vmem:[#allocation2 + $0x80] sm:$0xff]
      %v919 = vld [vmem:[#allocation2 + $0x88] sm:$0xff]
      %v920 = vld [vmem:[#allocation2 + $0x90] sm:$0xff]
      %v921 = vld [vmem:[#allocation2 + $0x98] sm:$0xff]
      %v922 = vld [vmem:[#allocation2 + $0xa0] sm:$0xff]
      %v923 = vld [vmem:[#allocation2 + $0xa8] sm:$0xff]
      %v924 = vld [vmem:[#allocation2 + $0xb0] sm:$0xff]
      %v925 = vld [vmem:[#allocation2 + $0xb8] sm:$0xff]
      %v926 = vld [vmem:[#allocation2 + $0xc0] sm:$0xff]
      %v927 = vld [vmem:[#allocation2 + $0xc8] sm:$0xff]
      %v928 = vld [vmem:[#allocation2 + $0xd0] sm:$0xff]
      %v929 = vld [vmem:[#allocation2 + $0xd8] sm:$0xff]
      %v930 = vld [vmem:[#allocation2 + $0xe0] sm:$0xff]
      %v931 = vld [vmem:[#allocation2 + $0xe8] sm:$0xff]
      %v932 = vld [vmem:[#allocation2 + $0xf0] sm:$0xff]
      %v933 = vld [vmem:[#allocation2 + $0xf8] sm:$0xff]
      %v934 = vld [vmem:[#allocation2 + $0x100] sm:$0xff]
      %v935 = vld [vmem:[#allocation2 + $0x108] sm:$0xff]
      %v936 = vld [vmem:[#allocation2 + $0x110] sm:$0xff]
      %v937 = vld [vmem:[#allocation2 + $0x118] sm:$0xff]
      %v938 = vld [vmem:[#allocation2 + $0x120] sm:$0xff]
      %v939 = vld [vmem:[#allocation2 + $0x128] sm:$0xff]
      %v940 = vld [vmem:[#allocation2 + $0x130] sm:$0xff]
      %v941 = vld [vmem:[#allocation2 + $0x138] sm:$0xff]
      %v942 = vld [vmem:[#allocation2 + $0x140] sm:$0xff]
      %v943 = vld [vmem:[#allocation2 + $0x148] sm:$0xff]
      %v944 = vld [vmem:[#allocation2 + $0x150] sm:$0xff]
      %v945 = vld [vmem:[#allocation2 + $0x158] sm:$0xff]
      %v946 = vld [vmem:[#allocation2 + $0x160] sm:$0xff]
      %v947 = vld [vmem:[%s313 + $0x18] sm:$0xff]
      %v948 = vld [vmem:[%s313 + $0x20] sm:$0xff]
      %v949 = vld [vmem:[%s313 + $0x28] sm:$0xff]
      %v950 = vld [vmem:[%s313 + $0x30] sm:$0xff]
      %v951 = vld [vmem:[%s313 + $0x38] sm:$0xff]
      %v952 = vld [vmem:[%s313 + $0x40] sm:$0xff]
      %v953 = vld [vmem:[%s313 + $0x48] sm:$0xff]
      %v954 = vld [vmem:[%s313 + $0x50] sm:$0xff]
      %v955 = vld [vmem:[%s313 + $0x58] sm:$0xff]
      %v956 = vld [vmem:[%s313 + $0x60] sm:$0xff]
      %v957 = vld [vmem:[%s313 + $0x68] sm:$0xff]
      %v958 = vld [vmem:[%s313 + $0x70] sm:$0xff]
      %v959 = vld [vmem:[%s313 + $0x78] sm:$0xff]
      %v960 = vld [vmem:[%s313 + $0x80] sm:$0xff]
      %v961 = vld [vmem:[%s313 + $0x88] sm:$0xff]
      %v962 = vld [vmem:[%s313 + $0x90] sm:$0xff]
      %v963 = vld [vmem:[%s313 + $0x98] sm:$0xff]
      %v964 = vld [vmem:[%s313 + $0xa0] sm:$0xff]
      %v965 = vld [vmem:[%s313 + $0xa8] sm:$0xff]
      %v966 = vld [vmem:[%s313 + $0xb0] sm:$0xff]
      %v967 = vld [vmem:[%s313 + $0xb8] sm:$0xff]
      %v968 = vld [vmem:[%s313 + $0xc0] sm:$0xff]
      %v969 = vld [vmem:[%s313 + $0xc8] sm:$0xff]
      %v970 = vld [vmem:[%s313 + $0xd0] sm:$0xff]
      %v971 = vld [vmem:[%s313 + $0xd8] sm:$0xff]
      %v972 = vld [vmem:[%s313 + $0xe0] sm:$0xff]
      %v973 = vld [vmem:[%s313 + $0xe8] sm:$0xff]
      %v974 = vld [vmem:[%s313 + $0xf0] sm:$0xff]
      %v975 = vld [vmem:[%s313 + $0xf8] sm:$0xff]
      %v976 = vld [vmem:[%s313 + $0x100] sm:$0xff]
      %v977 = vld [vmem:[%s313 + $0x108] sm:$0xff]
      %v978 = vld [vmem:[%s313 + $0x110] sm:$0xff]
      %v979 = vld [vmem:[%s313 + $0x118] sm:$0xff]
      %v980 = vld [vmem:[%s313 + $0x120] sm:$0xff]
      %v981 = vld [vmem:[%s313 + $0x128] sm:$0xff]
      %v982 = vld [vmem:[%s313 + $0x130] sm:$0xff]
      %v983 = vld [vmem:[%s313 + $0x138] sm:$0xff]
      %v984 = vld [vmem:[%s313 + $0x140] sm:$0xff]
      %v985 = vld [vmem:[%s313 + $0x148] sm:$0xff]
      %v986 = vld [vmem:[%s313 + $0x150] sm:$0xff]
      %v987 = vld [vmem:[%s313 + $0x158] sm:$0xff]
      %v988 = vld [vmem:[%s313 + $0x160] sm:$0xff]
      %v989 = vld [vmem:[%s313 + $0x168] sm:$0xff]
      %v990 = vld [vmem:[%s313 + $0x170] sm:$0xff]
      %v991 = vld [vmem:[%s313 + $0x178] sm:$0xff]
      %s992 = scalar_lea.vmem %s336, 24
      %v993 = vld [vmem:[%s992] sm:$0xff]
      %v994 = vld [vmem:[%s992 + $0x8] sm:$0xff]
      %v995 = vld [vmem:[%s992 + $0x10] sm:$0xff]
      %v997 = vsel %vm404, %v947, 0
      %v1000 = vsel %vm404, %v948, 0
      %v1003 = vsel %vm404, %v949, 0
      %v1006 = vsel %vm404, %v950, 0
      %v1009 = vsel %vm404, %v951, 0
      %v1012 = vsel %vm404, %v952, 0
      %v1015 = vsel %vm404, %v953, 0
      %v1018 = vsel %vm404, %v954, 0
      %v1021 = vsel %vm404, %v955, 0
      %v1024 = vsel %vm404, %v956, 0
      %v1027 = vsel %vm404, %v957, 0
      %v1030 = vsel %vm404, %v958, 0
      %v1033 = vsel %vm404, %v959, 0
      %v1036 = vsel %vm404, %v960, 0
      %v1039 = vsel %vm404, %v961, 0
      %v1042 = vsel %vm404, %v962, 0
      %v1045 = vsel %vm404, %v963, 0
      %v1048 = vsel %vm404, %v964, 0
      %v1051 = vsel %vm404, %v965, 0
      %v1054 = vsel %vm404, %v966, 0
      %v1057 = vsel %vm404, %v967, 0
      %v1060 = vsel %vm404, %v968, 0
      %v1063 = vsel %vm404, %v969, 0
      %v1066 = vsel %vm404, %v970, 0
      %v1069 = vsel %vm404, %v971, 0
      %v1072 = vsel %vm404, %v972, 0
      %v1075 = vsel %vm404, %v973, 0
      %v1078 = vsel %vm404, %v974, 0
      %v1081 = vsel %vm404, %v975, 0
      %v1084 = vsel %vm404, %v976, 0
      %v1087 = vsel %vm404, %v977, 0
      %v1090 = vsel %vm404, %v978, 0
      %v1093 = vsel %vm404, %v979, 0
      %v1096 = vsel %vm404, %v980, 0
      %v1099 = vsel %vm404, %v981, 0
      %v1102 = vsel %vm404, %v982, 0
      %v1105 = vsel %vm404, %v983, 0
      %v1108 = vsel %vm404, %v984, 0
      %v1111 = vsel %vm404, %v985, 0
      %v1114 = vsel %vm404, %v986, 0
      %v1117 = vsel %vm404, %v987, 0
      %v1120 = vsel %vm404, %v988, 0
      %v1123 = vsel %vm404, %v989, 0
      %v1126 = vsel %vm404, %v990, 0
      %v1129 = vsel %vm404, %v991, 0
      %1131 = vmatprep.subr.mxu0 0.0
      %1132 = vmatpush1.msra.mxu0 %v993
      %1133 = vmatprep.subr.mxu0 0.0
      %1134 = vmatpush1.msra.mxu0 %v994
      %1135 = vmatprep.subr.mxu0 0.0
      %1136 = vmatpush1.msra.mxu0 %v995
      %1137 = vmatprep.subr.mxu0 0.0
      %1138 = vmatpush1.msra.mxu0 0.0
      %1139 = vmatprep.subr.mxu0 0.0
      %1140 = vmatpush1.msra.mxu0 0.0
      %1141 = vmatprep.subr.mxu0 0.0
      %1142 = vmatpush1.msra.mxu0 0.0
      %1143 = vmatprep.subr.mxu0 0.0
      %1144 = vmatpush1.msra.mxu0 0.0
      %1145 = vmatprep.subr.mxu0 0.0
      %1146 = vmatpush1.msra.mxu0 0.0
      %1147 = vmatprep.subr.mxu0 0.0
      %1148 = vmatpush1.msra.mxu0 0.0
      %1149 = vmatprep.subr.mxu0 0.0
      %1150 = vmatpush1.msra.mxu0 0.0
      %1151 = vmatprep.subr.mxu0 0.0
      %1152 = vmatpush1.msra.mxu0 0.0
      %1153 = vmatprep.subr.mxu0 0.0
      %1154 = vmatpush1.msra.mxu0 0.0
      %1155 = vmatprep.subr.mxu0 0.0
      %1156 = vmatpush1.msra.mxu0 0.0
      %1157 = vmatprep.subr.mxu0 0.0
      %1158 = vmatpush1.msra.mxu0 0.0
      %1159 = vmatprep.subr.mxu0 0.0
      %1160 = vmatpush1.msra.mxu0 0.0
      %1161 = vmatprep.subr.mxu0 0.0
      %1162 = vmatpush1.msra.mxu0 0.0
      %1163 = vmatprep.subr.mxu0 0.0
      %1164 = vmatpush1.msra.mxu0 0.0
      %1165 = vmatprep.subr.mxu0 0.0
      %1166 = vmatpush1.msra.mxu0 0.0
      %1167 = vmatprep.subr.mxu0 0.0
      %1168 = vmatpush1.msra.mxu0 0.0
      %1169 = vmatprep.subr.mxu0 0.0
      %1170 = vmatpush1.msra.mxu0 0.0
      %1171 = vmatprep.subr.mxu0 0.0
      %1172 = vmatpush1.msra.mxu0 0.0
      %1173 = vmatprep.subr.mxu0 0.0
      %1174 = vmatpush1.msra.mxu0 0.0
      %1175 = vmatprep.subr.mxu0 0.0
      %1176 = vmatpush1.msra.mxu0 0.0
      %1177 = vmatprep.subr.mxu0 0.0
      %1178 = vmatpush1.msra.mxu0 0.0
      %1179 = vmatprep.subr.mxu0 0.0
      %1180 = vmatpush1.msra.mxu0 0.0
      %1181 = vmatprep.subr.mxu0 0.0
      %1182 = vmatpush1.msra.mxu0 0.0
      %1183 = vmatprep.subr.mxu0 0.0
      %1184 = vmatpush1.msra.mxu0 0.0
      %1185 = vmatprep.subr.mxu0 0.0
      %1186 = vmatpush1.msra.mxu0 0.0
      %1187 = vmatprep.subr.mxu0 0.0
      %1188 = vmatpush1.msra.mxu0 0.0
      %1189 = vmatprep.subr.mxu0 0.0
      %1190 = vmatpush1.msra.mxu0 0.0
      %1191 = vmatprep.subr.mxu0 0.0
      %1192 = vmatpush1.msra.mxu0 0.0
      %1193 = vmatprep.subr.mxu0 0.0
      %1194 = vmatpush1.msra.mxu0 0.0
      %1195 = vmatprep.mubr.f32.mxu0 0.0
      %1196 = vmatmul.mubr.f32.gmra.mrb[0].mxu0 %v997
      %v1197 = vpop.f32.mrb[0].mxu0
      %v1198 = vadd.f32 0.0, %v1197
      %v1199 = vpop.f32.mrb[0].mxu0
      %1200 = vmatprep.mubr.f32.mxu0 0.0
      %1201 = vmatmul.mubr.f32.gmra.mrb[0].mxu0 %v1000
      %v1202 = vpop.f32.mrb[0].mxu0
      %v1203 = vadd.f32 0.0, %v1202
      %v1204 = vpop.f32.mrb[0].mxu0
      %1205 = vmatprep.mubr.f32.mxu0 0.0
      %1206 = vmatmul.mubr.f32.gmra.mrb[0].mxu0 %v1003
      %v1207 = vpop.f32.mrb[0].mxu0
      %v1208 = vadd.f32 0.0, %v1207
      %v1209 = vpop.f32.mrb[0].mxu0
      %1210 = vmatprep.mubr.f32.mxu0 0.0
      %1211 = vmatmul.mubr.f32.gmra.mrb[0].mxu0 %v1006
      %v1212 = vpop.f32.mrb[0].mxu0
      %v1213 = vadd.f32 0.0, %v1212
      %v1214 = vpop.f32.mrb[0].mxu0
      %1215 = vmatprep.mubr.f32.mxu0 0.0
      %1216 = vmatmul.mubr.f32.gmra.mrb[0].mxu0 %v1009
      %v1217 = vpop.f32.mrb[0].mxu0
      %v1218 = vadd.f32 0.0, %v1217
      %v1219 = vpop.f32.mrb[0].mxu0
      %1220 = vmatprep.mubr.f32.mxu0 0.0
      %1221 = vmatmul.mubr.f32.gmra.mrb[0].mxu0 %v1012
      %v1222 = vpop.f32.mrb[0].mxu0
      %v1223 = vadd.f32 0.0, %v1222
      %v1224 = vpop.f32.mrb[0].mxu0
      %1225 = vmatprep.mubr.f32.mxu0 0.0
      %1226 = vmatmul.mubr.f32.gmra.mrb[0].mxu0 %v1015
      %v1227 = vpop.f32.mrb[0].mxu0
      %v1228 = vadd.f32 0.0, %v1227
      %v1229 = vpop.f32.mrb[0].mxu0
      %1230 = vmatprep.mubr.f32.mxu0 0.0
      %1231 = vmatmul.mubr.f32.gmra.mrb[0].mxu0 %v1018
      %v1232 = vpop.f32.mrb[0].mxu0
      %v1233 = vadd.f32 0.0, %v1232
      %v1234 = vpop.f32.mrb[0].mxu0
      %1235 = vmatprep.mubr.f32.mxu0 0.0
      %1236 = vmatmul.mubr.f32.gmra.mrb[0].mxu0 %v1021
      %v1237 = vpop.f32.mrb[0].mxu0
      %v1238 = vadd.f32 0.0, %v1237
      %v1239 = vpop.f32.mrb[0].mxu0
      %1240 = vmatprep.mubr.f32.mxu0 0.0
      %1241 = vmatmul.mubr.f32.gmra.mrb[0].mxu0 %v1024
      %v1242 = vpop.f32.mrb[0].mxu0
      %v1243 = vadd.f32 0.0, %v1242
      %v1244 = vpop.f32.mrb[0].mxu0
      %1245 = vmatprep.mubr.f32.mxu0 0.0
      %1246 = vmatmul.mubr.f32.gmra.mrb[0].mxu0 %v1027
      %v1247 = vpop.f32.mrb[0].mxu0
      %v1248 = vadd.f32 0.0, %v1247
      %v1249 = vpop.f32.mrb[0].mxu0
      %1250 = vmatprep.mubr.f32.mxu0 0.0
      %1251 = vmatmul.mubr.f32.gmra.mrb[0].mxu0 %v1030
      %v1252 = vpop.f32.mrb[0].mxu0
      %v1253 = vadd.f32 0.0, %v1252
      %v1254 = vpop.f32.mrb[0].mxu0
      %1255 = vmatprep.mubr.f32.mxu0 0.0
      %1256 = vmatmul.mubr.f32.gmra.mrb[0].mxu0 %v1033
      %v1257 = vpop.f32.mrb[0].mxu0
      %v1258 = vadd.f32 0.0, %v1257
      %v1259 = vpop.f32.mrb[0].mxu0
      %1260 = vmatprep.mubr.f32.mxu0 0.0
      %1261 = vmatmul.mubr.f32.gmra.mrb[0].mxu0 %v1036
      %v1262 = vpop.f32.mrb[0].mxu0
      %v1263 = vadd.f32 0.0, %v1262
      %v1264 = vpop.f32.mrb[0].mxu0
      %1265 = vmatprep.mubr.f32.mxu0 0.0
      %1266 = vmatmul.mubr.f32.gmra.mrb[0].mxu0 %v1039
      %v1267 = vpop.f32.mrb[0].mxu0
      %v1268 = vadd.f32 0.0, %v1267
      %v1269 = vpop.f32.mrb[0].mxu0
      %1270 = vmatprep.mubr.f32.mxu0 0.0
      %1271 = vmatmul.mubr.f32.gmra.mrb[0].mxu0 %v1042
      %v1272 = vpop.f32.mrb[0].mxu0
      %v1273 = vadd.f32 0.0, %v1272
      %v1274 = vpop.f32.mrb[0].mxu0
      %1275 = vmatprep.mubr.f32.mxu0 0.0
      %1276 = vmatmul.mubr.f32.gmra.mrb[0].mxu0 %v1045
      %v1277 = vpop.f32.mrb[0].mxu0
      %v1278 = vadd.f32 0.0, %v1277
      %v1279 = vpop.f32.mrb[0].mxu0
      %1280 = vmatprep.mubr.f32.mxu0 0.0
      %1281 = vmatmul.mubr.f32.gmra.mrb[0].mxu0 %v1048
      %v1282 = vpop.f32.mrb[0].mxu0
      %v1283 = vadd.f32 0.0, %v1282
      %v1284 = vpop.f32.mrb[0].mxu0
      %1285 = vmatprep.mubr.f32.mxu0 0.0
      %1286 = vmatmul.mubr.f32.gmra.mrb[0].mxu0 %v1051
      %v1287 = vpop.f32.mrb[0].mxu0
      %v1288 = vadd.f32 0.0, %v1287
      %v1289 = vpop.f32.mrb[0].mxu0
      %1290 = vmatprep.mubr.f32.mxu0 0.0
      %1291 = vmatmul.mubr.f32.gmra.mrb[0].mxu0 %v1054
      %v1292 = vpop.f32.mrb[0].mxu0
      %v1293 = vadd.f32 0.0, %v1292
      %v1294 = vpop.f32.mrb[0].mxu0
      %1295 = vmatprep.mubr.f32.mxu0 0.0
      %1296 = vmatmul.mubr.f32.gmra.mrb[0].mxu0 %v1057
      %v1297 = vpop.f32.mrb[0].mxu0
      %v1298 = vadd.f32 0.0, %v1297
      %v1299 = vpop.f32.mrb[0].mxu0
      %1300 = vmatprep.mubr.f32.mxu0 0.0
      %1301 = vmatmul.mubr.f32.gmra.mrb[0].mxu0 %v1060
      %v1302 = vpop.f32.mrb[0].mxu0
      %v1303 = vadd.f32 0.0, %v1302
      %v1304 = vpop.f32.mrb[0].mxu0
      %1305 = vmatprep.mubr.f32.mxu0 0.0
      %1306 = vmatmul.mubr.f32.gmra.mrb[0].mxu0 %v1063
      %v1307 = vpop.f32.mrb[0].mxu0
      %v1308 = vadd.f32 0.0, %v1307
      %v1309 = vpop.f32.mrb[0].mxu0
      %1310 = vmatprep.mubr.f32.mxu0 0.0
      %1311 = vmatmul.mubr.f32.gmra.mrb[0].mxu0 %v1066
      %v1312 = vpop.f32.mrb[0].mxu0
      %v1313 = vadd.f32 0.0, %v1312
      %v1314 = vpop.f32.mrb[0].mxu0
      %1315 = vmatprep.mubr.f32.mxu0 0.0
      %1316 = vmatmul.mubr.f32.gmra.mrb[0].mxu0 %v1069
      %v1317 = vpop.f32.mrb[0].mxu0
      %v1318 = vadd.f32 0.0, %v1317
      %v1319 = vpop.f32.mrb[0].mxu0
      %1320 = vmatprep.mubr.f32.mxu0 0.0
      %1321 = vmatmul.mubr.f32.gmra.mrb[0].mxu0 %v1072
      %v1322 = vpop.f32.mrb[0].mxu0
      %v1323 = vadd.f32 0.0, %v1322
      %v1324 = vpop.f32.mrb[0].mxu0
      %1325 = vmatprep.mubr.f32.mxu0 0.0
      %1326 = vmatmul.mubr.f32.gmra.mrb[0].mxu0 %v1075
      %v1327 = vpop.f32.mrb[0].mxu0
      %v1328 = vadd.f32 0.0, %v1327
      %v1329 = vpop.f32.mrb[0].mxu0
      %1330 = vmatprep.mubr.f32.mxu0 0.0
      %1331 = vmatmul.mubr.f32.gmra.mrb[0].mxu0 %v1078
      %v1332 = vpop.f32.mrb[0].mxu0
      %v1333 = vadd.f32 0.0, %v1332
      %v1334 = vpop.f32.mrb[0].mxu0
      %1335 = vmatprep.mubr.f32.mxu0 0.0
      %1336 = vmatmul.mubr.f32.gmra.mrb[0].mxu0 %v1081
      %v1337 = vpop.f32.mrb[0].mxu0
      %v1338 = vadd.f32 0.0, %v1337
      %v1339 = vpop.f32.mrb[0].mxu0
      %1340 = vmatprep.mubr.f32.mxu0 0.0
      %1341 = vmatmul.mubr.f32.gmra.mrb[0].mxu0 %v1084
      %v1342 = vpop.f32.mrb[0].mxu0
      %v1343 = vadd.f32 0.0, %v1342
      %v1344 = vpop.f32.mrb[0].mxu0
      %1345 = vmatprep.mubr.f32.mxu0 0.0
      %1346 = vmatmul.mubr.f32.gmra.mrb[0].mxu0 %v1087
      %v1347 = vpop.f32.mrb[0].mxu0
      %v1348 = vadd.f32 0.0, %v1347
      %v1349 = vpop.f32.mrb[0].mxu0
      %1350 = vmatprep.mubr.f32.mxu0 0.0
      %1351 = vmatmul.mubr.f32.gmra.mrb[0].mxu0 %v1090
      %v1352 = vpop.f32.mrb[0].mxu0
      %v1353 = vadd.f32 0.0, %v1352
      %v1354 = vpop.f32.mrb[0].mxu0
      %1355 = vmatprep.mubr.f32.mxu0 0.0
      %1356 = vmatmul.mubr.f32.gmra.mrb[0].mxu0 %v1093
      %v1357 = vpop.f32.mrb[0].mxu0
      %v1358 = vadd.f32 0.0, %v1357
      %v1359 = vpop.f32.mrb[0].mxu0
      %1360 = vmatprep.mubr.f32.mxu0 0.0
      %1361 = vmatmul.mubr.f32.gmra.mrb[0].mxu0 %v1096
      %v1362 = vpop.f32.mrb[0].mxu0
      %v1363 = vadd.f32 0.0, %v1362
      %v1364 = vpop.f32.mrb[0].mxu0
      %1365 = vmatprep.mubr.f32.mxu0 0.0
      %1366 = vmatmul.mubr.f32.gmra.mrb[0].mxu0 %v1099
      %v1367 = vpop.f32.mrb[0].mxu0
      %v1368 = vadd.f32 0.0, %v1367
      %v1369 = vpop.f32.mrb[0].mxu0
      %1370 = vmatprep.mubr.f32.mxu0 0.0
      %1371 = vmatmul.mubr.f32.gmra.mrb[0].mxu0 %v1102
      %v1372 = vpop.f32.mrb[0].mxu0
      %v1373 = vadd.f32 0.0, %v1372
      %v1374 = vpop.f32.mrb[0].mxu0
      %1375 = vmatprep.mubr.f32.mxu0 0.0
      %1376 = vmatmul.mubr.f32.gmra.mrb[0].mxu0 %v1105
      %v1377 = vpop.f32.mrb[0].mxu0
      %v1378 = vadd.f32 0.0, %v1377
      %v1379 = vpop.f32.mrb[0].mxu0
      %1380 = vmatprep.mubr.f32.mxu0 0.0
      %1381 = vmatmul.mubr.f32.gmra.mrb[0].mxu0 %v1108
      %v1382 = vpop.f32.mrb[0].mxu0
      %v1383 = vadd.f32 0.0, %v1382
      %v1384 = vpop.f32.mrb[0].mxu0
      %1385 = vmatprep.mubr.f32.mxu0 0.0
      %1386 = vmatmul.mubr.f32.gmra.mrb[0].mxu0 %v1111
      %v1387 = vpop.f32.mrb[0].mxu0
      %v1388 = vadd.f32 0.0, %v1387
      %v1389 = vpop.f32.mrb[0].mxu0
      %1390 = vmatprep.mubr.f32.mxu0 0.0
      %1391 = vmatmul.mubr.f32.gmra.mrb[0].mxu0 %v1114
      %v1392 = vpop.f32.mrb[0].mxu0
      %v1393 = vadd.f32 0.0, %v1392
      %v1394 = vpop.f32.mrb[0].mxu0
      %1395 = vmatprep.mubr.f32.mxu0 0.0
      %1396 = vmatmul.mubr.f32.gmra.mrb[0].mxu0 %v1117
      %v1397 = vpop.f32.mrb[0].mxu0
      %v1398 = vadd.f32 0.0, %v1397
      %v1399 = vpop.f32.mrb[0].mxu0
      %1400 = vmatprep.mubr.f32.mxu0 0.0
      %1401 = vmatmul.mubr.f32.gmra.mrb[0].mxu0 %v1120
      %v1402 = vpop.f32.mrb[0].mxu0
      %v1403 = vadd.f32 0.0, %v1402
      %v1404 = vpop.f32.mrb[0].mxu0
      %1405 = vmatprep.mubr.f32.mxu0 0.0
      %1406 = vmatmul.mubr.f32.gmra.mrb[0].mxu0 %v1123
      %v1407 = vpop.f32.mrb[0].mxu0
      %v1408 = vadd.f32 0.0, %v1407
      %v1409 = vpop.f32.mrb[0].mxu0
      %1410 = vmatprep.mubr.f32.mxu0 0.0
      %1411 = vmatmul.mubr.f32.gmra.mrb[0].mxu0 %v1126
      %v1412 = vpop.f32.mrb[0].mxu0
      %v1413 = vadd.f32 0.0, %v1412
      %v1414 = vpop.f32.mrb[0].mxu0
      %1415 = vmatprep.mubr.f32.mxu0 0.0
      %1416 = vmatmul.mubr.f32.gmra.mrb[0].mxu0 %v1129
      %v1417 = vpop.f32.mrb[0].mxu0
      %v1418 = vadd.f32 0.0, %v1417
      %v1419 = vpop.f32.mrb[0].mxu0
      %1420 = vdwg.mxu0
      %v1421 = vadd.f32 %v902, %v1198
      %v1422 = vadd.f32 %v903, %v1203
      %v1423 = vadd.f32 %v904, %v1208
      %v1424 = vadd.f32 %v905, %v1213
      %v1425 = vadd.f32 %v906, %v1218
      %v1426 = vadd.f32 %v907, %v1223
      %v1427 = vadd.f32 %v908, %v1228
      %v1428 = vadd.f32 %v909, %v1233
      %v1429 = vadd.f32 %v910, %v1238
      %v1430 = vadd.f32 %v911, %v1243
      %v1431 = vadd.f32 %v912, %v1248
      %v1432 = vadd.f32 %v913, %v1253
      %v1433 = vadd.f32 %v914, %v1258
      %v1434 = vadd.f32 %v915, %v1263
      %v1435 = vadd.f32 %v916, %v1268
      %v1436 = vadd.f32 %v917, %v1273
      %v1437 = vadd.f32 %v918, %v1278
      %v1438 = vadd.f32 %v919, %v1283
      %v1439 = vadd.f32 %v920, %v1288
      %v1440 = vadd.f32 %v921, %v1293
      %v1441 = vadd.f32 %v922, %v1298
      %v1442 = vadd.f32 %v923, %v1303
      %v1443 = vadd.f32 %v924, %v1308
      %v1444 = vadd.f32 %v925, %v1313
      %v1445 = vadd.f32 %v926, %v1318
      %v1446 = vadd.f32 %v927, %v1323
      %v1447 = vadd.f32 %v928, %v1328
      %v1448 = vadd.f32 %v929, %v1333
      %v1449 = vadd.f32 %v930, %v1338
      %v1450 = vadd.f32 %v931, %v1343
      %v1451 = vadd.f32 %v932, %v1348
      %v1452 = vadd.f32 %v933, %v1353
      %v1453 = vadd.f32 %v934, %v1358
      %v1454 = vadd.f32 %v935, %v1363
      %v1455 = vadd.f32 %v936, %v1368
      %v1456 = vadd.f32 %v937, %v1373
      %v1457 = vadd.f32 %v938, %v1378
      %v1458 = vadd.f32 %v939, %v1383
      %v1459 = vadd.f32 %v940, %v1388
      %v1460 = vadd.f32 %v941, %v1393
      %v1461 = vadd.f32 %v942, %v1398
      %v1462 = vadd.f32 %v943, %v1403
      %v1463 = vadd.f32 %v944, %v1408
      %v1464 = vadd.f32 %v945, %v1413
      %v1465 = vadd.f32 %v946, %v1418
      %1466 = vst [vmem:[#allocation2] sm:$0xff] %v1421
      %1467 = vst [vmem:[#allocation2 + $0x8] sm:$0xff] %v1422
      %1468 = vst [vmem:[#allocation2 + $0x10] sm:$0xff] %v1423
      %1469 = vst [vmem:[#allocation2 + $0x18] sm:$0xff] %v1424
      %1470 = vst [vmem:[#allocation2 + $0x20] sm:$0xff] %v1425
      %1471 = vst [vmem:[#allocation2 + $0x28] sm:$0xff] %v1426
      %1472 = vst [vmem:[#allocation2 + $0x30] sm:$0xff] %v1427
      %1473 = vst [vmem:[#allocation2 + $0x38] sm:$0xff] %v1428
      %1474 = vst [vmem:[#allocation2 + $0x40] sm:$0xff] %v1429
      %1475 = vst [vmem:[#allocation2 + $0x48] sm:$0xff] %v1430
      %1476 = vst [vmem:[#allocation2 + $0x50] sm:$0xff] %v1431
      %1477 = vst [vmem:[#allocation2 + $0x58] sm:$0xff] %v1432
      %1478 = vst [vmem:[#allocation2 + $0x60] sm:$0xff] %v1433
      %1479 = vst [vmem:[#allocation2 + $0x68] sm:$0xff] %v1434
      %1480 = vst [vmem:[#allocation2 + $0x70] sm:$0xff] %v1435
      %1481 = vst [vmem:[#allocation2 + $0x78] sm:$0xff] %v1436
      %1482 = vst [vmem:[#allocation2 + $0x80] sm:$0xff] %v1437
      %1483 = vst [vmem:[#allocation2 + $0x88] sm:$0xff] %v1438
      %1484 = vst [vmem:[#allocation2 + $0x90] sm:$0xff] %v1439
      %1485 = vst [vmem:[#allocation2 + $0x98] sm:$0xff] %v1440
      %1486 = vst [vmem:[#allocation2 + $0xa0] sm:$0xff] %v1441
      %1487 = vst [vmem:[#allocation2 + $0xa8] sm:$0xff] %v1442
      %1488 = vst [vmem:[#allocation2 + $0xb0] sm:$0xff] %v1443
      %1489 = vst [vmem:[#allocation2 + $0xb8] sm:$0xff] %v1444
      %1490 = vst [vmem:[#allocation2 + $0xc0] sm:$0xff] %v1445
      %1491 = vst [vmem:[#allocation2 + $0xc8] sm:$0xff] %v1446
      %1492 = vst [vmem:[#allocation2 + $0xd0] sm:$0xff] %v1447
      %1493 = vst [vmem:[#allocation2 + $0xd8] sm:$0xff] %v1448
      %1494 = vst [vmem:[#allocation2 + $0xe0] sm:$0xff] %v1449
      %1495 = vst [vmem:[#allocation2 + $0xe8] sm:$0xff] %v1450
      %1496 = vst [vmem:[#allocation2 + $0xf0] sm:$0xff] %v1451
      %1497 = vst [vmem:[#allocation2 + $0xf8] sm:$0xff] %v1452
      %1498 = vst [vmem:[#allocation2 + $0x100] sm:$0xff] %v1453
      %1499 = vst [vmem:[#allocation2 + $0x108] sm:$0xff] %v1454
      %1500 = vst [vmem:[#allocation2 + $0x110] sm:$0xff] %v1455
      %1501 = vst [vmem:[#allocation2 + $0x118] sm:$0xff] %v1456
      %1502 = vst [vmem:[#allocation2 + $0x120] sm:$0xff] %v1457
      %1503 = vst [vmem:[#allocation2 + $0x128] sm:$0xff] %v1458
      %1504 = vst [vmem:[#allocation2 + $0x130] sm:$0xff] %v1459
      %1505 = vst [vmem:[#allocation2 + $0x138] sm:$0xff] %v1460
      %1506 = vst [vmem:[#allocation2 + $0x140] sm:$0xff] %v1461
      %1507 = vst [vmem:[#allocation2 + $0x148] sm:$0xff] %v1462
      %1508 = vst [vmem:[#allocation2 + $0x150] sm:$0xff] %v1463
      %1509 = vst [vmem:[#allocation2 + $0x158] sm:$0xff] %v1464
      %1510 = vst [vmem:[#allocation2 + $0x160] sm:$0xff] %v1465
      %v1511 = vld [vmem:[#allocation2 + $0x168] sm:$0xff]
      %v1512 = vld [vmem:[#allocation2 + $0x170] sm:$0xff]
      %v1513 = vld [vmem:[#allocation2 + $0x178] sm:$0xff]
      %v1514 = vld [vmem:[%s329] sm:$0xff]
      %v1515 = vld [vmem:[%s329 + $0x8] sm:$0xff]
      %v1516 = vld [vmem:[%s329 + $0x10] sm:$0xff]
      %v1517 = vld [vmem:[%s992] sm:$0xff]
      %v1518 = vld [vmem:[%s992 + $0x8] sm:$0xff]
      %v1519 = vld [vmem:[%s992 + $0x10] sm:$0xff]
      %v1521 = vsel %vm404, %v1514, 0
      %v1524 = vsel %vm404, %v1515, 0
      %v1527 = vsel %vm404, %v1516, 0
      %1529 = vmatprep.subr.mxu0 0.0
      %1530 = vmatpush1.msra.mxu0 %v1517
      %1531 = vmatprep.subr.mxu0 0.0
      %1532 = vmatpush1.msra.mxu0 %v1518
      %1533 = vmatprep.subr.mxu0 0.0
      %1534 = vmatpush1.msra.mxu0 %v1519
      %1535 = vmatprep.subr.mxu0 0.0
      %1536 = vmatpush1.msra.mxu0 0.0
      %1537 = vmatprep.subr.mxu0 0.0
      %1538 = vmatpush1.msra.mxu0 0.0
      %1539 = vmatprep.subr.mxu0 0.0
      %1540 = vmatpush1.msra.mxu0 0.0
      %1541 = vmatprep.subr.mxu0 0.0
      %1542 = vmatpush1.msra.mxu0 0.0
      %1543 = vmatprep.subr.mxu0 0.0
      %1544 = vmatpush1.msra.mxu0 0.0
      %1545 = vmatprep.subr.mxu0 0.0
      %1546 = vmatpush1.msra.mxu0 0.0
      %1547 = vmatprep.subr.mxu0 0.0
      %1548 = vmatpush1.msra.mxu0 0.0
      %1549 = vmatprep.subr.mxu0 0.0
      %1550 = vmatpush1.msra.mxu0 0.0
      %1551 = vmatprep.subr.mxu0 0.0
      %1552 = vmatpush1.msra.mxu0 0.0
      %1553 = vmatprep.subr.mxu0 0.0
      %1554 = vmatpush1.msra.mxu0 0.0
      %1555 = vmatprep.subr.mxu0 0.0
      %1556 = vmatpush1.msra.mxu0 0.0
      %1557 = vmatprep.subr.mxu0 0.0
      %1558 = vmatpush1.msra.mxu0 0.0
      %1559 = vmatprep.subr.mxu0 0.0
      %1560 = vmatpush1.msra.mxu0 0.0
      %1561 = vmatprep.subr.mxu0 0.0
      %1562 = vmatpush1.msra.mxu0 0.0
      %1563 = vmatprep.subr.mxu0 0.0
      %1564 = vmatpush1.msra.mxu0 0.0
      %1565 = vmatprep.subr.mxu0 0.0
      %1566 = vmatpush1.msra.mxu0 0.0
      %1567 = vmatprep.subr.mxu0 0.0
      %1568 = vmatpush1.msra.mxu0 0.0
      %1569 = vmatprep.subr.mxu0 0.0
      %1570 = vmatpush1.msra.mxu0 0.0
      %1571 = vmatprep.subr.mxu0 0.0
      %1572 = vmatpush1.msra.mxu0 0.0
      %1573 = vmatprep.subr.mxu0 0.0
      %1574 = vmatpush1.msra.mxu0 0.0
      %1575 = vmatprep.subr.mxu0 0.0
      %1576 = vmatpush1.msra.mxu0 0.0
      %1577 = vmatprep.subr.mxu0 0.0
      %1578 = vmatpush1.msra.mxu0 0.0
      %1579 = vmatprep.subr.mxu0 0.0
      %1580 = vmatpush1.msra.mxu0 0.0
      %1581 = vmatprep.subr.mxu0 0.0
      %1582 = vmatpush1.msra.mxu0 0.0
      %1583 = vmatprep.subr.mxu0 0.0
      %1584 = vmatpush1.msra.mxu0 0.0
      %1585 = vmatprep.subr.mxu0 0.0
      %1586 = vmatpush1.msra.mxu0 0.0
      %1587 = vmatprep.subr.mxu0 0.0
      %1588 = vmatpush1.msra.mxu0 0.0
      %1589 = vmatprep.subr.mxu0 0.0
      %1590 = vmatpush1.msra.mxu0 0.0
      %1591 = vmatprep.subr.mxu0 0.0
      %1592 = vmatpush1.msra.mxu0 0.0
      %1593 = vmatprep.mubr.f32.mxu0 0.0
      %1594 = vmatmul.mubr.f32.gmra.mrb[0].mxu0 %v1521
      %v1595 = vpop.f32.mrb[0].mxu0
      %v1596 = vadd.f32 0.0, %v1595
      %v1597 = vpop.f32.mrb[0].mxu0
      %1598 = vmatprep.mubr.f32.mxu0 0.0
      %1599 = vmatmul.mubr.f32.gmra.mrb[0].mxu0 %v1524
      %v1600 = vpop.f32.mrb[0].mxu0
      %v1601 = vadd.f32 0.0, %v1600
      %v1602 = vpop.f32.mrb[0].mxu0
      %1603 = vmatprep.mubr.f32.mxu0 0.0
      %1604 = vmatmul.mubr.f32.gmra.mrb[0].mxu0 %v1527
      %v1605 = vpop.f32.mrb[0].mxu0
      %v1606 = vadd.f32 0.0, %v1605
      %v1607 = vpop.f32.mrb[0].mxu0
      %1608 = vdwg.mxu0
      %v1609 = vadd.f32 %v1511, %v1596
      %v1610 = vadd.f32 %v1512, %v1601
      %v1611 = vadd.f32 %v1513, %v1606
      %1612 = vst [vmem:[#allocation2 + $0x168] sm:$0xff] %v1609
      %1613 = vst [vmem:[#allocation2 + $0x170] sm:$0xff] %v1610
      %1614 = vst [vmem:[#allocation2 + $0x178] sm:$0xff] %v1611
      %v1615 = vld [vmem:[#allocation2] sm:$0xff]
      %v1616 = vld [vmem:[#allocation2 + $0x8] sm:$0xff]
      %v1617 = vld [vmem:[#allocation2 + $0x10] sm:$0xff]
      %v1618 = vld [vmem:[#allocation2 + $0x18] sm:$0xff]
      %v1619 = vld [vmem:[#allocation2 + $0x20] sm:$0xff]
      %v1620 = vld [vmem:[#allocation2 + $0x28] sm:$0xff]
      %v1621 = vld [vmem:[#allocation2 + $0x30] sm:$0xff]
      %v1622 = vld [vmem:[#allocation2 + $0x38] sm:$0xff]
      %v1623 = vld [vmem:[#allocation2 + $0x40] sm:$0xff]
      %v1624 = vld [vmem:[#allocation2 + $0x48] sm:$0xff]
      %v1625 = vld [vmem:[#allocation2 + $0x50] sm:$0xff]
      %v1626 = vld [vmem:[#allocation2 + $0x58] sm:$0xff]
      %v1627 = vld [vmem:[#allocation2 + $0x60] sm:$0xff]
      %v1628 = vld [vmem:[#allocation2 + $0x68] sm:$0xff]
      %v1629 = vld [vmem:[#allocation2 + $0x70] sm:$0xff]
      %v1630 = vld [vmem:[#allocation2 + $0x78] sm:$0xff]
      %v1631 = vld [vmem:[#allocation2 + $0x80] sm:$0xff]
      %v1632 = vld [vmem:[#allocation2 + $0x88] sm:$0xff]
      %v1633 = vld [vmem:[#allocation2 + $0x90] sm:$0xff]
      %v1634 = vld [vmem:[#allocation2 + $0x98] sm:$0xff]
      %v1635 = vld [vmem:[#allocation2 + $0xa0] sm:$0xff]
      %v1636 = vld [vmem:[#allocation2 + $0xa8] sm:$0xff]
      %v1637 = vld [vmem:[#allocation2 + $0xb0] sm:$0xff]
      %v1638 = vld [vmem:[#allocation2 + $0xb8] sm:$0xff]
      %v1639 = vld [vmem:[#allocation2 + $0xc0] sm:$0xff]
      %v1640 = vld [vmem:[#allocation2 + $0xc8] sm:$0xff]
      %v1641 = vld [vmem:[#allocation2 + $0xd0] sm:$0xff]
      %v1642 = vld [vmem:[#allocation2 + $0xd8] sm:$0xff]
      %v1643 = vld [vmem:[#allocation2 + $0xe0] sm:$0xff]
      %v1644 = vld [vmem:[#allocation2 + $0xe8] sm:$0xff]
      %v1645 = vld [vmem:[#allocation2 + $0xf0] sm:$0xff]
      %v1646 = vld [vmem:[#allocation2 + $0xf8] sm:$0xff]
      %v1647 = vld [vmem:[#allocation2 + $0x100] sm:$0xff]
      %v1648 = vld [vmem:[#allocation2 + $0x108] sm:$0xff]
      %v1649 = vld [vmem:[#allocation2 + $0x110] sm:$0xff]
      %v1650 = vld [vmem:[#allocation2 + $0x118] sm:$0xff]
      %v1651 = vld [vmem:[#allocation2 + $0x120] sm:$0xff]
      %v1652 = vld [vmem:[#allocation2 + $0x128] sm:$0xff]
      %v1653 = vld [vmem:[#allocation2 + $0x130] sm:$0xff]
      %v1654 = vld [vmem:[#allocation2 + $0x138] sm:$0xff]
      %v1655 = vld [vmem:[#allocation2 + $0x140] sm:$0xff]
      %v1656 = vld [vmem:[#allocation2 + $0x148] sm:$0xff]
      %v1657 = vld [vmem:[%s313 + $0x30] sm:$0xff]
      %v1658 = vld [vmem:[%s313 + $0x38] sm:$0xff]
      %v1659 = vld [vmem:[%s313 + $0x40] sm:$0xff]
      %v1660 = vld [vmem:[%s313 + $0x48] sm:$0xff]
      %v1661 = vld [vmem:[%s313 + $0x50] sm:$0xff]
      %v1662 = vld [vmem:[%s313 + $0x58] sm:$0xff]
      %v1663 = vld [vmem:[%s313 + $0x60] sm:$0xff]
      %v1664 = vld [vmem:[%s313 + $0x68] sm:$0xff]
      %v1665 = vld [vmem:[%s313 + $0x70] sm:$0xff]
      %v1666 = vld [vmem:[%s313 + $0x78] sm:$0xff]
      %v1667 = vld [vmem:[%s313 + $0x80] sm:$0xff]
      %v1668 = vld [vmem:[%s313 + $0x88] sm:$0xff]
      %v1669 = vld [vmem:[%s313 + $0x90] sm:$0xff]
      %v1670 = vld [vmem:[%s313 + $0x98] sm:$0xff]
      %v1671 = vld [vmem:[%s313 + $0xa0] sm:$0xff]
      %v1672 = vld [vmem:[%s313 + $0xa8] sm:$0xff]
      %v1673 = vld [vmem:[%s313 + $0xb0] sm:$0xff]
      %v1674 = vld [vmem:[%s313 + $0xb8] sm:$0xff]
      %v1675 = vld [vmem:[%s313 + $0xc0] sm:$0xff]
      %v1676 = vld [vmem:[%s313 + $0xc8] sm:$0xff]
      %v1677 = vld [vmem:[%s313 + $0xd0] sm:$0xff]
      %v1678 = vld [vmem:[%s313 + $0xd8] sm:$0xff]
      %v1679 = vld [vmem:[%s313 + $0xe0] sm:$0xff]
      %v1680 = vld [vmem:[%s313 + $0xe8] sm:$0xff]
      %v1681 = vld [vmem:[%s313 + $0xf0] sm:$0xff]
      %v1682 = vld [vmem:[%s313 + $0xf8] sm:$0xff]
      %v1683 = vld [vmem:[%s313 + $0x100] sm:$0xff]
      %v1684 = vld [vmem:[%s313 + $0x108] sm:$0xff]
      %v1685 = vld [vmem:[%s313 + $0x110] sm:$0xff]
      %v1686 = vld [vmem:[%s313 + $0x118] sm:$0xff]
      %v1687 = vld [vmem:[%s313 + $0x120] sm:$0xff]
      %v1688 = vld [vmem:[%s313 + $0x128] sm:$0xff]
      %v1689 = vld [vmem:[%s313 + $0x130] sm:$0xff]
      %v1690 = vld [vmem:[%s313 + $0x138] sm:$0xff]
      %v1691 = vld [vmem:[%s313 + $0x140] sm:$0xff]
      %v1692 = vld [vmem:[%s313 + $0x148] sm:$0xff]
      %v1693 = vld [vmem:[%s313 + $0x150] sm:$0xff]
      %v1694 = vld [vmem:[%s313 + $0x158] sm:$0xff]
      %v1695 = vld [vmem:[%s313 + $0x160] sm:$0xff]
      %v1696 = vld [vmem:[%s313 + $0x168] sm:$0xff]
      %v1697 = vld [vmem:[%s313 + $0x170] sm:$0xff]
      %v1698 = vld [vmem:[%s313 + $0x178] sm:$0xff]
      %s1699 = scalar_lea.vmem %s336, 48
      %v1700 = vld [vmem:[%s1699] sm:$0xff]
      %v1701 = vld [vmem:[%s1699 + $0x8] sm:$0xff]
      %v1702 = vld [vmem:[%s1699 + $0x10] sm:$0xff]
      %v1704 = vsel %vm404, %v1657, 0
      %v1707 = vsel %vm404, %v1658, 0
      %v1710 = vsel %vm404, %v1659, 0
      %v1713 = vsel %vm404, %v1660, 0
      %v1716 = vsel %vm404, %v1661, 0
      %v1719 = vsel %vm404, %v1662, 0
      %v1722 = vsel %vm404, %v1663, 0
      %v1725 = vsel %vm404, %v1664, 0
      %v1728 = vsel %vm404, %v1665, 0
      %v1731 = vsel %vm404, %v1666, 0
      %v1734 = vsel %vm404, %v1667, 0
      %v1737 = vsel %vm404, %v1668, 0
      %v1740 = vsel %vm404, %v1669, 0
      %v1743 = vsel %vm404, %v1670, 0
      %v1746 = vsel %vm404, %v1671, 0
      %v1749 = vsel %vm404, %v1672, 0
      %v1752 = vsel %vm404, %v1673, 0
      %v1755 = vsel %vm404, %v1674, 0
      %v1758 = vsel %vm404, %v1675, 0
      %v1761 = vsel %vm404, %v1676, 0
      %v1764 = vsel %vm404, %v1677, 0
      %v1767 = vsel %vm404, %v1678, 0
      %v1770 = vsel %vm404, %v1679, 0
      %v1773 = vsel %vm404, %v1680, 0
      %v1776 = vsel %vm404, %v1681, 0
      %v1779 = vsel %vm404, %v1682, 0
      %v1782 = vsel %vm404, %v1683, 0
      %v1785 = vsel %vm404, %v1684, 0
      %v1788 = vsel %vm404, %v1685, 0
      %v1791 = vsel %vm404, %v1686, 0
      %v1794 = vsel %vm404, %v1687, 0
      %v1797 = vsel %vm404, %v1688, 0
      %v1800 = vsel %vm404, %v1689, 0
      %v1803 = vsel %vm404, %v1690, 0
      %v1806 = vsel %vm404, %v1691, 0
      %v1809 = vsel %vm404, %v1692, 0
      %v1812 = vsel %vm404, %v1693, 0
      %v1815 = vsel %vm404, %v1694, 0
      %v1818 = vsel %vm404, %v1695, 0
      %v1821 = vsel %vm404, %v1696, 0
      %v1824 = vsel %vm404, %v1697, 0
      %v1827 = vsel %vm404, %v1698, 0
      %1829 = vmatprep.subr.mxu0 0.0
      %1830 = vmatpush1.msra.mxu0 %v1700
      %1831 = vmatprep.subr.mxu0 0.0
      %1832 = vmatpush1.msra.mxu0 %v1701
      %1833 = vmatprep.subr.mxu0 0.0
      %1834 = vmatpush1.msra.mxu0 %v1702
      %1835 = vmatprep.subr.mxu0 0.0
      %1836 = vmatpush1.msra.mxu0 0.0
      %1837 = vmatprep.subr.mxu0 0.0
      %1838 = vmatpush1.msra.mxu0 0.0
      %1839 = vmatprep.subr.mxu0 0.0
      %1840 = vmatpush1.msra.mxu0 0.0
      %1841 = vmatprep.subr.mxu0 0.0
      %1842 = vmatpush1.msra.mxu0 0.0
      %1843 = vmatprep.subr.mxu0 0.0
      %1844 = vmatpush1.msra.mxu0 0.0
      %1845 = vmatprep.subr.mxu0 0.0
      %1846 = vmatpush1.msra.mxu0 0.0
      %1847 = vmatprep.subr.mxu0 0.0
      %1848 = vmatpush1.msra.mxu0 0.0
      %1849 = vmatprep.subr.mxu0 0.0
      %1850 = vmatpush1.msra.mxu0 0.0
      %1851 = vmatprep.subr.mxu0 0.0
      %1852 = vmatpush1.msra.mxu0 0.0
      %1853 = vmatprep.subr.mxu0 0.0
      %1854 = vmatpush1.msra.mxu0 0.0
      %1855 = vmatprep.subr.mxu0 0.0
      %1856 = vmatpush1.msra.mxu0 0.0
      %1857 = vmatprep.subr.mxu0 0.0
      %1858 = vmatpush1.msra.mxu0 0.0
      %1859 = vmatprep.subr.mxu0 0.0
      %1860 = vmatpush1.msra.mxu0 0.0
      %1861 = vmatprep.subr.mxu0 0.0
      %1862 = vmatpush1.msra.mxu0 0.0
      %1863 = vmatprep.subr.mxu0 0.0
      %1864 = vmatpush1.msra.mxu0 0.0
      %1865 = vmatprep.subr.mxu0 0.0
      %1866 = vmatpush1.msra.mxu0 0.0
      %1867 = vmatprep.subr.mxu0 0.0
      %1868 = vmatpush1.msra.mxu0 0.0
      %1869 = vmatprep.subr.mxu0 0.0
      %1870 = vmatpush1.msra.mxu0 0.0
      %1871 = vmatprep.subr.mxu0 0.0
      %1872 = vmatpush1.msra.mxu0 0.0
      %1873 = vmatprep.subr.mxu0 0.0
      %1874 = vmatpush1.msra.mxu0 0.0
      %1875 = vmatprep.subr.mxu0 0.0
      %1876 = vmatpush1.msra.mxu0 0.0
      %1877 = vmatprep.subr.mxu0 0.0
      %1878 = vmatpush1.msra.mxu0 0.0
      %1879 = vmatprep.subr.mxu0 0.0
      %1880 = vmatpush1.msra.mxu0 0.0
      %1881 = vmatprep.subr.mxu0 0.0
      %1882 = vmatpush1.msra.mxu0 0.0
      %1883 = vmatprep.subr.mxu0 0.0
      %1884 = vmatpush1.msra.mxu0 0.0
      %1885 = vmatprep.subr.mxu0 0.0
      %1886 = vmatpush1.msra.mxu0 0.0
      %1887 = vmatprep.subr.mxu0 0.0
      %1888 = vmatpush1.msra.mxu0 0.0
      %1889 = vmatprep.subr.mxu0 0.0
      %1890 = vmatpush1.msra.mxu0 0.0
      %1891 = vmatprep.subr.mxu0 0.0
      %1892 = vmatpush1.msra.mxu0 0.0
      %1893 = vmatprep.mubr.f32.mxu0 0.0
      %1894 = vmatmul.mubr.f32.gmra.mrb[0].mxu0 %v1704
      %v1895 = vpop.f32.mrb[0].mxu0
      %v1896 = vadd.f32 0.0, %v1895
      %v1897 = vpop.f32.mrb[0].mxu0
      %1898 = vmatprep.mubr.f32.mxu0 0.0
      %1899 = vmatmul.mubr.f32.gmra.mrb[0].mxu0 %v1707
      %v1900 = vpop.f32.mrb[0].mxu0
      %v1901 = vadd.f32 0.0, %v1900
      %v1902 = vpop.f32.mrb[0].mxu0
      %1903 = vmatprep.mubr.f32.mxu0 0.0
      %1904 = vmatmul.mubr.f32.gmra.mrb[0].mxu0 %v1710
      %v1905 = vpop.f32.mrb[0].mxu0
      %v1906 = vadd.f32 0.0, %v1905
      %v1907 = vpop.f32.mrb[0].mxu0
      %1908 = vmatprep.mubr.f32.mxu0 0.0
      %1909 = vmatmul.mubr.f32.gmra.mrb[0].mxu0 %v1713
      %v1910 = vpop.f32.mrb[0].mxu0
      %v1911 = vadd.f32 0.0, %v1910
      %v1912 = vpop.f32.mrb[0].mxu0
      %1913 = vmatprep.mubr.f32.mxu0 0.0
      %1914 = vmatmul.mubr.f32.gmra.mrb[0].mxu0 %v1716
      %v1915 = vpop.f32.mrb[0].mxu0
      %v1916 = vadd.f32 0.0, %v1915
      %v1917 = vpop.f32.mrb[0].mxu0
      %1918 = vmatprep.mubr.f32.mxu0 0.0
      %1919 = vmatmul.mubr.f32.gmra.mrb[0].mxu0 %v1719
      %v1920 = vpop.f32.mrb[0].mxu0
      %v1921 = vadd.f32 0.0, %v1920
      %v1922 = vpop.f32.mrb[0].mxu0
      %1923 = vmatprep.mubr.f32.mxu0 0.0
      %1924 = vmatmul.mubr.f32.gmra.mrb[0].mxu0 %v1722
      %v1925 = vpop.f32.mrb[0].mxu0
      %v1926 = vadd.f32 0.0, %v1925
      %v1927 = vpop.f32.mrb[0].mxu0
      %1928 = vmatprep.mubr.f32.mxu0 0.0
      %1929 = vmatmul.mubr.f32.gmra.mrb[0].mxu0 %v1725
      %v1930 = vpop.f32.mrb[0].mxu0
      %v1931 = vadd.f32 0.0, %v1930
      %v1932 = vpop.f32.mrb[0].mxu0
      %1933 = vmatprep.mubr.f32.mxu0 0.0
      %1934 = vmatmul.mubr.f32.gmra.mrb[0].mxu0 %v1728
      %v1935 = vpop.f32.mrb[0].mxu0
      %v1936 = vadd.f32 0.0, %v1935
      %v1937 = vpop.f32.mrb[0].mxu0
      %1938 = vmatprep.mubr.f32.mxu0 0.0
      %1939 = vmatmul.mubr.f32.gmra.mrb[0].mxu0 %v1731
      %v1940 = vpop.f32.mrb[0].mxu0
      %v1941 = vadd.f32 0.0, %v1940
      %v1942 = vpop.f32.mrb[0].mxu0
      %1943 = vmatprep.mubr.f32.mxu0 0.0
      %1944 = vmatmul.mubr.f32.gmra.mrb[0].mxu0 %v1734
      %v1945 = vpop.f32.mrb[0].mxu0
      %v1946 = vadd.f32 0.0, %v1945
      %v1947 = vpop.f32.mrb[0].mxu0
      %1948 = vmatprep.mubr.f32.mxu0 0.0
      %1949 = vmatmul.mubr.f32.gmra.mrb[0].mxu0 %v1737
      %v1950 = vpop.f32.mrb[0].mxu0
      %v1951 = vadd.f32 0.0, %v1950
      %v1952 = vpop.f32.mrb[0].mxu0
      %1953 = vmatprep.mubr.f32.mxu0 0.0
      %1954 = vmatmul.mubr.f32.gmra.mrb[0].mxu0 %v1740
      %v1955 = vpop.f32.mrb[0].mxu0
      %v1956 = vadd.f32 0.0, %v1955
      %v1957 = vpop.f32.mrb[0].mxu0
      %1958 = vmatprep.mubr.f32.mxu0 0.0
      %1959 = vmatmul.mubr.f32.gmra.mrb[0].mxu0 %v1743
      %v1960 = vpop.f32.mrb[0].mxu0
      %v1961 = vadd.f32 0.0, %v1960
      %v1962 = vpop.f32.mrb[0].mxu0
      %1963 = vmatprep.mubr.f32.mxu0 0.0
      %1964 = vmatmul.mubr.f32.gmra.mrb[0].mxu0 %v1746
      %v1965 = vpop.f32.mrb[0].mxu0
      %v1966 = vadd.f32 0.0, %v1965
      %v1967 = vpop.f32.mrb[0].mxu0
      %1968 = vmatprep.mubr.f32.mxu0 0.0
      %1969 = vmatmul.mubr.f32.gmra.mrb[0].mxu0 %v1749
      %v1970 = vpop.f32.mrb[0].mxu0
      %v1971 = vadd.f32 0.0, %v1970
      %v1972 = vpop.f32.mrb[0].mxu0
      %1973 = vmatprep.mubr.f32.mxu0 0.0
      %1974 = vmatmul.mubr.f32.gmra.mrb[0].mxu0 %v1752
      %v1975 = vpop.f32.mrb[0].mxu0
      %v1976 = vadd.f32 0.0, %v1975
      %v1977 = vpop.f32.mrb[0].mxu0
      %1978 = vmatprep.mubr.f32.mxu0 0.0
      %1979 = vmatmul.mubr.f32.gmra.mrb[0].mxu0 %v1755
      %v1980 = vpop.f32.mrb[0].mxu0
      %v1981 = vadd.f32 0.0, %v1980
      %v1982 = vpop.f32.mrb[0].mxu0
      %1983 = vmatprep.mubr.f32.mxu0 0.0
      %1984 = vmatmul.mubr.f32.gmra.mrb[0].mxu0 %v1758
      %v1985 = vpop.f32.mrb[0].mxu0
      %v1986 = vadd.f32 0.0, %v1985
      %v1987 = vpop.f32.mrb[0].mxu0
      %1988 = vmatprep.mubr.f32.mxu0 0.0
      %1989 = vmatmul.mubr.f32.gmra.mrb[0].mxu0 %v1761
      %v1990 = vpop.f32.mrb[0].mxu0
      %v1991 = vadd.f32 0.0, %v1990
      %v1992 = vpop.f32.mrb[0].mxu0
      %1993 = vmatprep.mubr.f32.mxu0 0.0
      %1994 = vmatmul.mubr.f32.gmra.mrb[0].mxu0 %v1764
      %v1995 = vpop.f32.mrb[0].mxu0
      %v1996 = vadd.f32 0.0, %v1995
      %v1997 = vpop.f32.mrb[0].mxu0
      %1998 = vmatprep.mubr.f32.mxu0 0.0
      %1999 = vmatmul.mubr.f32.gmra.mrb[0].mxu0 %v1767
      %v2000 = vpop.f32.mrb[0].mxu0
      %v2001 = vadd.f32 0.0, %v2000
      %v2002 = vpop.f32.mrb[0].mxu0
      %2003 = vmatprep.mubr.f32.mxu0 0.0
      %2004 = vmatmul.mubr.f32.gmra.mrb[0].mxu0 %v1770
      %v2005 = vpop.f32.mrb[0].mxu0
      %v2006 = vadd.f32 0.0, %v2005
      %v2007 = vpop.f32.mrb[0].mxu0
      %2008 = vmatprep.mubr.f32.mxu0 0.0
      %2009 = vmatmul.mubr.f32.gmra.mrb[0].mxu0 %v1773
      %v2010 = vpop.f32.mrb[0].mxu0
      %v2011 = vadd.f32 0.0, %v2010
      %v2012 = vpop.f32.mrb[0].mxu0
      %2013 = vmatprep.mubr.f32.mxu0 0.0
      %2014 = vmatmul.mubr.f32.gmra.mrb[0].mxu0 %v1776
      %v2015 = vpop.f32.mrb[0].mxu0
      %v2016 = vadd.f32 0.0, %v2015
      %v2017 = vpop.f32.mrb[0].mxu0
      %2018 = vmatprep.mubr.f32.mxu0 0.0
      %2019 = vmatmul.mubr.f32.gmra.mrb[0].mxu0 %v1779
      %v2020 = vpop.f32.mrb[0].mxu0
      %v2021 = vadd.f32 0.0, %v2020
      %v2022 = vpop.f32.mrb[0].mxu0
      %2023 = vmatprep.mubr.f32.mxu0 0.0
      %2024 = vmatmul.mubr.f32.gmra.mrb[0].mxu0 %v1782
      %v2025 = vpop.f32.mrb[0].mxu0
      %v2026 = vadd.f32 0.0, %v2025
      %v2027 = vpop.f32.mrb[0].mxu0
      %2028 = vmatprep.mubr.f32.mxu0 0.0
      %2029 = vmatmul.mubr.f32.gmra.mrb[0].mxu0 %v1785
      %v2030 = vpop.f32.mrb[0].mxu0
      %v2031 = vadd.f32 0.0, %v2030
      %v2032 = vpop.f32.mrb[0].mxu0
      %2033 = vmatprep.mubr.f32.mxu0 0.0
      %2034 = vmatmul.mubr.f32.gmra.mrb[0].mxu0 %v1788
      %v2035 = vpop.f32.mrb[0].mxu0
      %v2036 = vadd.f32 0.0, %v2035
      %v2037 = vpop.f32.mrb[0].mxu0
      %2038 = vmatprep.mubr.f32.mxu0 0.0
      %2039 = vmatmul.mubr.f32.gmra.mrb[0].mxu0 %v1791
      %v2040 = vpop.f32.mrb[0].mxu0
      %v2041 = vadd.f32 0.0, %v2040
      %v2042 = vpop.f32.mrb[0].mxu0
      %2043 = vmatprep.mubr.f32.mxu0 0.0
      %2044 = vmatmul.mubr.f32.gmra.mrb[0].mxu0 %v1794
      %v2045 = vpop.f32.mrb[0].mxu0
      %v2046 = vadd.f32 0.0, %v2045
      %v2047 = vpop.f32.mrb[0].mxu0
      %2048 = vmatprep.mubr.f32.mxu0 0.0
      %2049 = vmatmul.mubr.f32.gmra.mrb[0].mxu0 %v1797
      %v2050 = vpop.f32.mrb[0].mxu0
      %v2051 = vadd.f32 0.0, %v2050
      %v2052 = vpop.f32.mrb[0].mxu0
      %2053 = vmatprep.mubr.f32.mxu0 0.0
      %2054 = vmatmul.mubr.f32.gmra.mrb[0].mxu0 %v1800
      %v2055 = vpop.f32.mrb[0].mxu0
      %v2056 = vadd.f32 0.0, %v2055
      %v2057 = vpop.f32.mrb[0].mxu0
      %2058 = vmatprep.mubr.f32.mxu0 0.0
      %2059 = vmatmul.mubr.f32.gmra.mrb[0].mxu0 %v1803
      %v2060 = vpop.f32.mrb[0].mxu0
      %v2061 = vadd.f32 0.0, %v2060
      %v2062 = vpop.f32.mrb[0].mxu0
      %2063 = vmatprep.mubr.f32.mxu0 0.0
      %2064 = vmatmul.mubr.f32.gmra.mrb[0].mxu0 %v1806
      %v2065 = vpop.f32.mrb[0].mxu0
      %v2066 = vadd.f32 0.0, %v2065
      %v2067 = vpop.f32.mrb[0].mxu0
      %2068 = vmatprep.mubr.f32.mxu0 0.0
      %2069 = vmatmul.mubr.f32.gmra.mrb[0].mxu0 %v1809
      %v2070 = vpop.f32.mrb[0].mxu0
      %v2071 = vadd.f32 0.0, %v2070
      %v2072 = vpop.f32.mrb[0].mxu0
      %2073 = vmatprep.mubr.f32.mxu0 0.0
      %2074 = vmatmul.mubr.f32.gmra.mrb[0].mxu0 %v1812
      %v2075 = vpop.f32.mrb[0].mxu0
      %v2076 = vadd.f32 0.0, %v2075
      %v2077 = vpop.f32.mrb[0].mxu0
      %2078 = vmatprep.mubr.f32.mxu0 0.0
      %2079 = vmatmul.mubr.f32.gmra.mrb[0].mxu0 %v1815
      %v2080 = vpop.f32.mrb[0].mxu0
      %v2081 = vadd.f32 0.0, %v2080
      %v2082 = vpop.f32.mrb[0].mxu0
      %2083 = vmatprep.mubr.f32.mxu0 0.0
      %2084 = vmatmul.mubr.f32.gmra.mrb[0].mxu0 %v1818
      %v2085 = vpop.f32.mrb[0].mxu0
      %v2086 = vadd.f32 0.0, %v2085
      %v2087 = vpop.f32.mrb[0].mxu0
      %2088 = vmatprep.mubr.f32.mxu0 0.0
      %2089 = vmatmul.mubr.f32.gmra.mrb[0].mxu0 %v1821
      %v2090 = vpop.f32.mrb[0].mxu0
      %v2091 = vadd.f32 0.0, %v2090
      %v2092 = vpop.f32.mrb[0].mxu0
      %2093 = vmatprep.mubr.f32.mxu0 0.0
      %2094 = vmatmul.mubr.f32.gmra.mrb[0].mxu0 %v1824
      %v2095 = vpop.f32.mrb[0].mxu0
      %v2096 = vadd.f32 0.0, %v2095
      %v2097 = vpop.f32.mrb[0].mxu0
      %2098 = vmatprep.mubr.f32.mxu0 0.0
      %2099 = vmatmul.mubr.f32.gmra.mrb[0].mxu0 %v1827
      %v2100 = vpop.f32.mrb[0].mxu0
      %v2101 = vadd.f32 0.0, %v2100
      %v2102 = vpop.f32.mrb[0].mxu0
      %2103 = vdwg.mxu0
      %v2104 = vadd.f32 %v1615, %v1896
      %v2105 = vadd.f32 %v1616, %v1901
      %v2106 = vadd.f32 %v1617, %v1906
      %v2107 = vadd.f32 %v1618, %v1911
      %v2108 = vadd.f32 %v1619, %v1916
      %v2109 = vadd.f32 %v1620, %v1921
      %v2110 = vadd.f32 %v1621, %v1926
      %v2111 = vadd.f32 %v1622, %v1931
      %v2112 = vadd.f32 %v1623, %v1936
      %v2113 = vadd.f32 %v1624, %v1941
      %v2114 = vadd.f32 %v1625, %v1946
      %v2115 = vadd.f32 %v1626, %v1951
      %v2116 = vadd.f32 %v1627, %v1956
      %v2117 = vadd.f32 %v1628, %v1961
      %v2118 = vadd.f32 %v1629, %v1966
      %v2119 = vadd.f32 %v1630, %v1971
      %v2120 = vadd.f32 %v1631, %v1976
      %v2121 = vadd.f32 %v1632, %v1981
      %v2122 = vadd.f32 %v1633, %v1986
      %v2123 = vadd.f32 %v1634, %v1991
      %v2124 = vadd.f32 %v1635, %v1996
      %v2125 = vadd.f32 %v1636, %v2001
      %v2126 = vadd.f32 %v1637, %v2006
      %v2127 = vadd.f32 %v1638, %v2011
      %v2128 = vadd.f32 %v1639, %v2016
      %v2129 = vadd.f32 %v1640, %v2021
      %v2130 = vadd.f32 %v1641, %v2026
      %v2131 = vadd.f32 %v1642, %v2031
      %v2132 = vadd.f32 %v1643, %v2036
      %v2133 = vadd.f32 %v1644, %v2041
      %v2134 = vadd.f32 %v1645, %v2046
      %v2135 = vadd.f32 %v1646, %v2051
      %v2136 = vadd.f32 %v1647, %v2056
      %v2137 = vadd.f32 %v1648, %v2061
      %v2138 = vadd.f32 %v1649, %v2066
      %v2139 = vadd.f32 %v1650, %v2071
      %v2140 = vadd.f32 %v1651, %v2076
      %v2141 = vadd.f32 %v1652, %v2081
      %v2142 = vadd.f32 %v1653, %v2086
      %v2143 = vadd.f32 %v1654, %v2091
      %v2144 = vadd.f32 %v1655, %v2096
      %v2145 = vadd.f32 %v1656, %v2101
      %2146 = vst [vmem:[#allocation2] sm:$0xff] %v2104
      %2147 = vst [vmem:[#allocation2 + $0x8] sm:$0xff] %v2105
      %2148 = vst [vmem:[#allocation2 + $0x10] sm:$0xff] %v2106
      %2149 = vst [vmem:[#allocation2 + $0x18] sm:$0xff] %v2107
      %2150 = vst [vmem:[#allocation2 + $0x20] sm:$0xff] %v2108
      %2151 = vst [vmem:[#allocation2 + $0x28] sm:$0xff] %v2109
      %2152 = vst [vmem:[#allocation2 + $0x30] sm:$0xff] %v2110
      %2153 = vst [vmem:[#allocation2 + $0x38] sm:$0xff] %v2111
      %2154 = vst [vmem:[#allocation2 + $0x40] sm:$0xff] %v2112
      %2155 = vst [vmem:[#allocation2 + $0x48] sm:$0xff] %v2113
      %2156 = vst [vmem:[#allocation2 + $0x50] sm:$0xff] %v2114
      %2157 = vst [vmem:[#allocation2 + $0x58] sm:$0xff] %v2115
      %2158 = vst [vmem:[#allocation2 + $0x60] sm:$0xff] %v2116
      %2159 = vst [vmem:[#allocation2 + $0x68] sm:$0xff] %v2117
      %2160 = vst [vmem:[#allocation2 + $0x70] sm:$0xff] %v2118
      %2161 = vst [vmem:[#allocation2 + $0x78] sm:$0xff] %v2119
      %2162 = vst [vmem:[#allocation2 + $0x80] sm:$0xff] %v2120
      %2163 = vst [vmem:[#allocation2 + $0x88] sm:$0xff] %v2121
      %2164 = vst [vmem:[#allocation2 + $0x90] sm:$0xff] %v2122
      %2165 = vst [vmem:[#allocation2 + $0x98] sm:$0xff] %v2123
      %2166 = vst [vmem:[#allocation2 + $0xa0] sm:$0xff] %v2124
      %2167 = vst [vmem:[#allocation2 + $0xa8] sm:$0xff] %v2125
      %2168 = vst [vmem:[#allocation2 + $0xb0] sm:$0xff] %v2126
      %2169 = vst [vmem:[#allocation2 + $0xb8] sm:$0xff] %v2127
      %2170 = vst [vmem:[#allocation2 + $0xc0] sm:$0xff] %v2128
      %2171 = vst [vmem:[#allocation2 + $0xc8] sm:$0xff] %v2129
      %2172 = vst [vmem:[#allocation2 + $0xd0] sm:$0xff] %v2130
      %2173 = vst [vmem:[#allocation2 + $0xd8] sm:$0xff] %v2131
      %2174 = vst [vmem:[#allocation2 + $0xe0] sm:$0xff] %v2132
      %2175 = vst [vmem:[#allocation2 + $0xe8] sm:$0xff] %v2133
      %2176 = vst [vmem:[#allocation2 + $0xf0] sm:$0xff] %v2134
      %2177 = vst [vmem:[#allocation2 + $0xf8] sm:$0xff] %v2135
      %2178 = vst [vmem:[#allocation2 + $0x100] sm:$0xff] %v2136
      %2179 = vst [vmem:[#allocation2 + $0x108] sm:$0xff] %v2137
      %2180 = vst [vmem:[#allocation2 + $0x110] sm:$0xff] %v2138
      %2181 = vst [vmem:[#allocation2 + $0x118] sm:$0xff] %v2139
      %2182 = vst [vmem:[#allocation2 + $0x120] sm:$0xff] %v2140
      %2183 = vst [vmem:[#allocation2 + $0x128] sm:$0xff] %v2141
      %2184 = vst [vmem:[#allocation2 + $0x130] sm:$0xff] %v2142
      %2185 = vst [vmem:[#allocation2 + $0x138] sm:$0xff] %v2143
      %2186 = vst [vmem:[#allocation2 + $0x140] sm:$0xff] %v2144
      %2187 = vst [vmem:[#allocation2 + $0x148] sm:$0xff] %v2145
      %v2188 = vld [vmem:[#allocation2 + $0x150] sm:$0xff]
      %v2189 = vld [vmem:[#allocation2 + $0x158] sm:$0xff]
      %v2190 = vld [vmem:[#allocation2 + $0x160] sm:$0xff]
      %v2191 = vld [vmem:[#allocation2 + $0x168] sm:$0xff]
      %v2192 = vld [vmem:[#allocation2 + $0x170] sm:$0xff]
      %v2193 = vld [vmem:[#allocation2 + $0x178] sm:$0xff]
      %v2194 = vld [vmem:[%s329] sm:$0xff]
      %v2195 = vld [vmem:[%s329 + $0x8] sm:$0xff]
      %v2196 = vld [vmem:[%s329 + $0x10] sm:$0xff]
      %v2197 = vld [vmem:[%s329 + $0x18] sm:$0xff]
      %v2198 = vld [vmem:[%s329 + $0x20] sm:$0xff]
      %v2199 = vld [vmem:[%s329 + $0x28] sm:$0xff]
      %v2200 = vld [vmem:[%s1699] sm:$0xff]
      %v2201 = vld [vmem:[%s1699 + $0x8] sm:$0xff]
      %v2202 = vld [vmem:[%s1699 + $0x10] sm:$0xff]
      %v2204 = vsel %vm404, %v2194, 0
      %v2207 = vsel %vm404, %v2195, 0
      %v2210 = vsel %vm404, %v2196, 0
      %v2213 = vsel %vm404, %v2197, 0
      %v2216 = vsel %vm404, %v2198, 0
      %v2219 = vsel %vm404, %v2199, 0
      %2221 = vmatprep.subr.mxu0 0.0
      %2222 = vmatpush1.msra.mxu0 %v2200
      %2223 = vmatprep.subr.mxu0 0.0
      %2224 = vmatpush1.msra.mxu0 %v2201
      %2225 = vmatprep.subr.mxu0 0.0
      %2226 = vmatpush1.msra.mxu0 %v2202
      %2227 = vmatprep.subr.mxu0 0.0
      %2228 = vmatpush1.msra.mxu0 0.0
      %2229 = vmatprep.subr.mxu0 0.0
      %2230 = vmatpush1.msra.mxu0 0.0
      %2231 = vmatprep.subr.mxu0 0.0
      %2232 = vmatpush1.msra.mxu0 0.0
      %2233 = vmatprep.subr.mxu0 0.0
      %2234 = vmatpush1.msra.mxu0 0.0
      %2235 = vmatprep.subr.mxu0 0.0
      %2236 = vmatpush1.msra.mxu0 0.0
      %2237 = vmatprep.subr.mxu0 0.0
      %2238 = vmatpush1.msra.mxu0 0.0
      %2239 = vmatprep.subr.mxu0 0.0
      %2240 = vmatpush1.msra.mxu0 0.0
      %2241 = vmatprep.subr.mxu0 0.0
      %2242 = vmatpush1.msra.mxu0 0.0
      %2243 = vmatprep.subr.mxu0 0.0
      %2244 = vmatpush1.msra.mxu0 0.0
      %2245 = vmatprep.subr.mxu0 0.0
      %2246 = vmatpush1.msra.mxu0 0.0
      %2247 = vmatprep.subr.mxu0 0.0
      %2248 = vmatpush1.msra.mxu0 0.0
      %2249 = vmatprep.subr.mxu0 0.0
      %2250 = vmatpush1.msra.mxu0 0.0
      %2251 = vmatprep.subr.mxu0 0.0
      %2252 = vmatpush1.msra.mxu0 0.0
      %2253 = vmatprep.subr.mxu0 0.0
      %2254 = vmatpush1.msra.mxu0 0.0
      %2255 = vmatprep.subr.mxu0 0.0
      %2256 = vmatpush1.msra.mxu0 0.0
      %2257 = vmatprep.subr.mxu0 0.0
      %2258 = vmatpush1.msra.mxu0 0.0
      %2259 = vmatprep.subr.mxu0 0.0
      %2260 = vmatpush1.msra.mxu0 0.0
      %2261 = vmatprep.subr.mxu0 0.0
      %2262 = vmatpush1.msra.mxu0 0.0
      %2263 = vmatprep.subr.mxu0 0.0
      %2264 = vmatpush1.msra.mxu0 0.0
      %2265 = vmatprep.subr.mxu0 0.0
      %2266 = vmatpush1.msra.mxu0 0.0
      %2267 = vmatprep.subr.mxu0 0.0
      %2268 = vmatpush1.msra.mxu0 0.0
      %2269 = vmatprep.subr.mxu0 0.0
      %2270 = vmatpush1.msra.mxu0 0.0
      %2271 = vmatprep.subr.mxu0 0.0
      %2272 = vmatpush1.msra.mxu0 0.0
      %2273 = vmatprep.subr.mxu0 0.0
      %2274 = vmatpush1.msra.mxu0 0.0
      %2275 = vmatprep.subr.mxu0 0.0
      %2276 = vmatpush1.msra.mxu0 0.0
      %2277 = vmatprep.subr.mxu0 0.0
      %2278 = vmatpush1.msra.mxu0 0.0
      %2279 = vmatprep.subr.mxu0 0.0
      %2280 = vmatpush1.msra.mxu0 0.0
      %2281 = vmatprep.subr.mxu0 0.0
      %2282 = vmatpush1.msra.mxu0 0.0
      %2283 = vmatprep.subr.mxu0 0.0
      %2284 = vmatpush1.msra.mxu0 0.0
      %2285 = vmatprep.mubr.f32.mxu0 0.0
      %2286 = vmatmul.mubr.f32.gmra.mrb[0].mxu0 %v2204
      %v2287 = vpop.f32.mrb[0].mxu0
      %v2288 = vadd.f32 0.0, %v2287
      %v2289 = vpop.f32.mrb[0].mxu0
      %2290 = vmatprep.mubr.f32.mxu0 0.0
      %2291 = vmatmul.mubr.f32.gmra.mrb[0].mxu0 %v2207
      %v2292 = vpop.f32.mrb[0].mxu0
      %v2293 = vadd.f32 0.0, %v2292
      %v2294 = vpop.f32.mrb[0].mxu0
      %2295 = vmatprep.mubr.f32.mxu0 0.0
      %2296 = vmatmul.mubr.f32.gmra.mrb[0].mxu0 %v2210
      %v2297 = vpop.f32.mrb[0].mxu0
      %v2298 = vadd.f32 0.0, %v2297
      %v2299 = vpop.f32.mrb[0].mxu0
      %2300 = vmatprep.mubr.f32.mxu0 0.0
      %2301 = vmatmul.mubr.f32.gmra.mrb[0].mxu0 %v2213
      %v2302 = vpop.f32.mrb[0].mxu0
      %v2303 = vadd.f32 0.0, %v2302
      %v2304 = vpop.f32.mrb[0].mxu0
      %2305 = vmatprep.mubr.f32.mxu0 0.0
      %2306 = vmatmul.mubr.f32.gmra.mrb[0].mxu0 %v2216
      %v2307 = vpop.f32.mrb[0].mxu0
      %v2308 = vadd.f32 0.0, %v2307
      %v2309 = vpop.f32.mrb[0].mxu0
      %2310 = vmatprep.mubr.f32.mxu0 0.0
      %2311 = vmatmul.mubr.f32.gmra.mrb[0].mxu0 %v2219
      %v2312 = vpop.f32.mrb[0].mxu0
      %v2313 = vadd.f32 0.0, %v2312
      %v2314 = vpop.f32.mrb[0].mxu0
      %2315 = vdwg.mxu0
      %v2316 = vadd.f32 %v2188, %v2288
      %v2317 = vadd.f32 %v2189, %v2293
      %v2318 = vadd.f32 %v2190, %v2298
      %v2319 = vadd.f32 %v2191, %v2303
      %v2320 = vadd.f32 %v2192, %v2308
      %v2321 = vadd.f32 %v2193, %v2313
      %2322 = vst [vmem:[#allocation2 + $0x150] sm:$0xff] %v2316
      %2323 = vst [vmem:[#allocation2 + $0x158] sm:$0xff] %v2317
      %2324 = vst [vmem:[#allocation2 + $0x160] sm:$0xff] %v2318
      %2325 = vst [vmem:[#allocation2 + $0x168] sm:$0xff] %v2319
      %2326 = vst [vmem:[#allocation2 + $0x170] sm:$0xff] %v2320
      %2327 = vst [vmem:[#allocation2 + $0x178] sm:$0xff] %v2321
      %v2328 = vld [vmem:[#allocation2] sm:$0xff]
      %v2329 = vld [vmem:[#allocation2 + $0x8] sm:$0xff]
      %v2330 = vld [vmem:[#allocation2 + $0x10] sm:$0xff]
      %v2331 = vld [vmem:[#allocation2 + $0x18] sm:$0xff]
      %v2332 = vld [vmem:[#allocation2 + $0x20] sm:$0xff]
      %v2333 = vld [vmem:[#allocation2 + $0x28] sm:$0xff]
      %v2334 = vld [vmem:[#allocation2 + $0x30] sm:$0xff]
      %v2335 = vld [vmem:[#allocation2 + $0x38] sm:$0xff]
      %v2336 = vld [vmem:[#allocation2 + $0x40] sm:$0xff]
      %v2337 = vld [vmem:[#allocation2 + $0x48] sm:$0xff]
      %v2338 = vld [vmem:[#allocation2 + $0x50] sm:$0xff]
      %v2339 = vld [vmem:[#allocation2 + $0x58] sm:$0xff]
      %v2340 = vld [vmem:[#allocation2 + $0x60] sm:$0xff]
      %v2341 = vld [vmem:[#allocation2 + $0x68] sm:$0xff]
      %v2342 = vld [vmem:[#allocation2 + $0x70] sm:$0xff]
      %v2343 = vld [vmem:[#allocation2 + $0x78] sm:$0xff]
      %v2344 = vld [vmem:[#allocation2 + $0x80] sm:$0xff]
      %v2345 = vld [vmem:[#allocation2 + $0x88] sm:$0xff]
      %v2346 = vld [vmem:[#allocation2 + $0x90] sm:$0xff]
      %v2347 = vld [vmem:[#allocation2 + $0x98] sm:$0xff]
      %v2348 = vld [vmem:[#allocation2 + $0xa0] sm:$0xff]
      %v2349 = vld [vmem:[#allocation2 + $0xa8] sm:$0xff]
      %v2350 = vld [vmem:[#allocation2 + $0xb0] sm:$0xff]
      %v2351 = vld [vmem:[#allocation2 + $0xb8] sm:$0xff]
      %v2352 = vld [vmem:[#allocation2 + $0xc0] sm:$0xff]
      %v2353 = vld [vmem:[#allocation2 + $0xc8] sm:$0xff]
      %v2354 = vld [vmem:[#allocation2 + $0xd0] sm:$0xff]
      %v2355 = vld [vmem:[#allocation2 + $0xd8] sm:$0xff]
      %v2356 = vld [vmem:[#allocation2 + $0xe0] sm:$0xff]
      %v2357 = vld [vmem:[#allocation2 + $0xe8] sm:$0xff]
      %v2358 = vld [vmem:[#allocation2 + $0xf0] sm:$0xff]
      %v2359 = vld [vmem:[#allocation2 + $0xf8] sm:$0xff]
      %v2360 = vld [vmem:[#allocation2 + $0x100] sm:$0xff]
      %v2361 = vld [vmem:[#allocation2 + $0x108] sm:$0xff]
      %v2362 = vld [vmem:[#allocation2 + $0x110] sm:$0xff]
      %v2363 = vld [vmem:[#allocation2 + $0x118] sm:$0xff]
      %v2364 = vld [vmem:[#allocation2 + $0x120] sm:$0xff]
      %v2365 = vld [vmem:[#allocation2 + $0x128] sm:$0xff]
      %v2366 = vld [vmem:[#allocation2 + $0x130] sm:$0xff]
      %v2367 = vld [vmem:[#allocation2 + $0x138] sm:$0xff]
      %v2368 = vld [vmem:[#allocation2 + $0x140] sm:$0xff]
      %v2369 = vld [vmem:[#allocation2 + $0x148] sm:$0xff]
      %v2370 = vld [vmem:[#allocation2 + $0x150] sm:$0xff]
      %v2371 = vld [vmem:[#allocation2 + $0x158] sm:$0xff]
      %v2372 = vld [vmem:[#allocation2 + $0x160] sm:$0xff]
      %v2373 = vld [vmem:[#allocation2 + $0x168] sm:$0xff]
      %v2374 = vld [vmem:[#allocation2 + $0x170] sm:$0xff]
      %v2375 = vld [vmem:[#allocation2 + $0x178] sm:$0xff]
      %v2376 = vld [vmem:[%s339] sm:$0x1]
      %v2378 = vlaneseq
      %v2379 = vshrl.u32 %v2378, 7
      %v2380 = vsub.s32 0, %v2379
      %v2381 = vrot.slane %v2376, %v2380
      %v2383 = vadd.f32 %v2328, %v2381
      %v2384 = vadd.f32 %v2329, %v2381
      %v2385 = vadd.f32 %v2330, %v2381
      %v2386 = vadd.f32 %v2331, %v2381
      %v2387 = vadd.f32 %v2332, %v2381
      %v2388 = vadd.f32 %v2333, %v2381
      %v2389 = vadd.f32 %v2334, %v2381
      %v2390 = vadd.f32 %v2335, %v2381
      %v2391 = vadd.f32 %v2336, %v2381
      %v2392 = vadd.f32 %v2337, %v2381
      %v2393 = vadd.f32 %v2338, %v2381
      %v2394 = vadd.f32 %v2339, %v2381
      %v2395 = vadd.f32 %v2340, %v2381
      %v2396 = vadd.f32 %v2341, %v2381
      %v2397 = vadd.f32 %v2342, %v2381
      %v2398 = vadd.f32 %v2343, %v2381
      %v2399 = vadd.f32 %v2344, %v2381
      %v2400 = vadd.f32 %v2345, %v2381
      %v2401 = vadd.f32 %v2346, %v2381
      %v2402 = vadd.f32 %v2347, %v2381
      %v2403 = vadd.f32 %v2348, %v2381
      %v2404 = vadd.f32 %v2349, %v2381
      %v2405 = vadd.f32 %v2350, %v2381
      %v2406 = vadd.f32 %v2351, %v2381
      %v2407 = vadd.f32 %v2352, %v2381
      %v2408 = vadd.f32 %v2353, %v2381
      %v2409 = vadd.f32 %v2354, %v2381
      %v2410 = vadd.f32 %v2355, %v2381
      %v2411 = vadd.f32 %v2356, %v2381
      %v2412 = vadd.f32 %v2357, %v2381
      %v2413 = vadd.f32 %v2358, %v2381
      %v2414 = vadd.f32 %v2359, %v2381
      %v2415 = vadd.f32 %v2360, %v2381
      %v2416 = vadd.f32 %v2361, %v2381
      %v2417 = vadd.f32 %v2362, %v2381
      %v2418 = vadd.f32 %v2363, %v2381
      %v2419 = vadd.f32 %v2364, %v2381
      %v2420 = vadd.f32 %v2365, %v2381
      %v2421 = vadd.f32 %v2366, %v2381
      %v2422 = vadd.f32 %v2367, %v2381
      %v2423 = vadd.f32 %v2368, %v2381
      %v2424 = vadd.f32 %v2369, %v2381
      %v2425 = vadd.f32 %v2370, %v2381
      %v2426 = vadd.f32 %v2371, %v2381
      %v2427 = vadd.f32 %v2372, %v2381
      %v2428 = vadd.f32 %v2373, %v2381
      %v2429 = vadd.f32 %v2374, %v2381
      %v2430 = vadd.f32 %v2375, %v2381
      %v2431 = vxor.u32 %v2383, 2147483648
      %v2432 = vxor.u32 %v2384, 2147483648
      %v2433 = vxor.u32 %v2385, 2147483648
      %v2434 = vxor.u32 %v2386, 2147483648
      %v2435 = vxor.u32 %v2387, 2147483648
      %v2436 = vxor.u32 %v2388, 2147483648
      %v2437 = vxor.u32 %v2389, 2147483648
      %v2438 = vxor.u32 %v2390, 2147483648
      %v2439 = vxor.u32 %v2391, 2147483648
      %v2440 = vxor.u32 %v2392, 2147483648
      %v2441 = vxor.u32 %v2393, 2147483648
      %v2442 = vxor.u32 %v2394, 2147483648
      %v2443 = vxor.u32 %v2395, 2147483648
      %v2444 = vxor.u32 %v2396, 2147483648
      %v2445 = vxor.u32 %v2397, 2147483648
      %v2446 = vxor.u32 %v2398, 2147483648
      %v2447 = vxor.u32 %v2399, 2147483648
      %v2448 = vxor.u32 %v2400, 2147483648
      %v2449 = vxor.u32 %v2401, 2147483648
      %v2450 = vxor.u32 %v2402, 2147483648
      %v2451 = vxor.u32 %v2403, 2147483648
      %v2452 = vxor.u32 %v2404, 2147483648
      %v2453 = vxor.u32 %v2405, 2147483648
      %v2454 = vxor.u32 %v2406, 2147483648
      %v2455 = vxor.u32 %v2407, 2147483648
      %v2456 = vxor.u32 %v2408, 2147483648
      %v2457 = vxor.u32 %v2409, 2147483648
      %v2458 = vxor.u32 %v2410, 2147483648
      %v2459 = vxor.u32 %v2411, 2147483648
      %v2460 = vxor.u32 %v2412, 2147483648
      %v2461 = vxor.u32 %v2413, 2147483648
      %v2462 = vxor.u32 %v2414, 2147483648
      %v2463 = vxor.u32 %v2415, 2147483648
      %v2464 = vxor.u32 %v2416, 2147483648
      %v2465 = vxor.u32 %v2417, 2147483648
      %v2466 = vxor.u32 %v2418, 2147483648
      %v2467 = vxor.u32 %v2419, 2147483648
      %v2468 = vxor.u32 %v2420, 2147483648
      %v2469 = vxor.u32 %v2421, 2147483648
      %v2470 = vxor.u32 %v2422, 2147483648
      %v2471 = vxor.u32 %v2423, 2147483648
      %v2472 = vxor.u32 %v2424, 2147483648
      %v2473 = vxor.u32 %v2425, 2147483648
      %v2474 = vxor.u32 %v2426, 2147483648
      %v2475 = vxor.u32 %v2427, 2147483648
      %v2476 = vxor.u32 %v2428, 2147483648
      %v2477 = vxor.u32 %v2429, 2147483648
      %v2478 = vxor.u32 %v2430, 2147483648
      %v2479 = vmul.f32 %v2431, 1.442695
      %v2480 = vpow.pop %v2479
      %v2481 = vmul.f32 %v2432, 1.442695
      %v2482 = vpow.pop %v2481
      %v2483 = vmul.f32 %v2433, 1.442695
      %v2484 = vpow.pop %v2483
      %v2485 = vmul.f32 %v2434, 1.442695
      %v2486 = vpow.pop %v2485
      %v2487 = vmul.f32 %v2435, 1.442695
      %v2488 = vpow.pop %v2487
      %v2489 = vmul.f32 %v2436, 1.442695
      %v2490 = vpow.pop %v2489
      %v2491 = vmul.f32 %v2437, 1.442695
      %v2492 = vpow.pop %v2491
      %v2493 = vmul.f32 %v2438, 1.442695
      %v2494 = vpow.pop %v2493
      %v2495 = vmul.f32 %v2439, 1.442695
      %v2496 = vpow.pop %v2495
      %v2497 = vmul.f32 %v2440, 1.442695
      %v2498 = vpow.pop %v2497
      %v2499 = vmul.f32 %v2441, 1.442695
      %v2500 = vpow.pop %v2499
      %v2501 = vmul.f32 %v2442, 1.442695
      %v2502 = vpow.pop %v2501
      %v2503 = vmul.f32 %v2443, 1.442695
      %v2504 = vpow.pop %v2503
      %v2505 = vmul.f32 %v2444, 1.442695
      %v2506 = vpow.pop %v2505
      %v2507 = vmul.f32 %v2445, 1.442695
      %v2508 = vpow.pop %v2507
      %v2509 = vmul.f32 %v2446, 1.442695
      %v2510 = vpow.pop %v2509
      %v2511 = vmul.f32 %v2447, 1.442695
      %v2512 = vpow.pop %v2511
      %v2513 = vmul.f32 %v2448, 1.442695
      %v2514 = vpow.pop %v2513
      %v2515 = vmul.f32 %v2449, 1.442695
      %v2516 = vpow.pop %v2515
      %v2517 = vmul.f32 %v2450, 1.442695
      %v2518 = vpow.pop %v2517
      %v2519 = vmul.f32 %v2451, 1.442695
      %v2520 = vpow.pop %v2519
      %v2521 = vmul.f32 %v2452, 1.442695
      %v2522 = vpow.pop %v2521
      %v2523 = vmul.f32 %v2453, 1.442695
      %v2524 = vpow.pop %v2523
      %v2525 = vmul.f32 %v2454, 1.442695
      %v2526 = vpow.pop %v2525
      %v2527 = vmul.f32 %v2455, 1.442695
      %v2528 = vpow.pop %v2527
      %v2529 = vmul.f32 %v2456, 1.442695
      %v2530 = vpow.pop %v2529
      %v2531 = vmul.f32 %v2457, 1.442695
      %v2532 = vpow.pop %v2531
      %v2533 = vmul.f32 %v2458, 1.442695
      %v2534 = vpow.pop %v2533
      %v2535 = vmul.f32 %v2459, 1.442695
      %v2536 = vpow.pop %v2535
      %v2537 = vmul.f32 %v2460, 1.442695
      %v2538 = vpow.pop %v2537
      %v2539 = vmul.f32 %v2461, 1.442695
      %v2540 = vpow.pop %v2539
      %v2541 = vmul.f32 %v2462, 1.442695
      %v2542 = vpow.pop %v2541
      %v2543 = vmul.f32 %v2463, 1.442695
      %v2544 = vpow.pop %v2543
      %v2545 = vmul.f32 %v2464, 1.442695
      %v2546 = vpow.pop %v2545
      %v2547 = vmul.f32 %v2465, 1.442695
      %v2548 = vpow.pop %v2547
      %v2549 = vmul.f32 %v2466, 1.442695
      %v2550 = vpow.pop %v2549
      %v2551 = vmul.f32 %v2467, 1.442695
      %v2552 = vpow.pop %v2551
      %v2553 = vmul.f32 %v2468, 1.442695
      %v2554 = vpow.pop %v2553
      %v2555 = vmul.f32 %v2469, 1.442695
      %v2556 = vpow.pop %v2555
      %v2557 = vmul.f32 %v2470, 1.442695
      %v2558 = vpow.pop %v2557
      %v2559 = vmul.f32 %v2471, 1.442695
      %v2560 = vpow.pop %v2559
      %v2561 = vmul.f32 %v2472, 1.442695
      %v2562 = vpow.pop %v2561
      %v2563 = vmul.f32 %v2473, 1.442695
      %v2564 = vpow.pop %v2563
      %v2565 = vmul.f32 %v2474, 1.442695
      %v2566 = vpow.pop %v2565
      %v2567 = vmul.f32 %v2475, 1.442695
      %v2568 = vpow.pop %v2567
      %v2569 = vmul.f32 %v2476, 1.442695
      %v2570 = vpow.pop %v2569
      %v2571 = vmul.f32 %v2477, 1.442695
      %v2572 = vpow.pop %v2571
      %v2573 = vmul.f32 %v2478, 1.442695
      %v2574 = vpow.pop %v2573
      %v2575 = vadd.f32 %v2480, 1.0
      %v2576 = vadd.f32 %v2482, 1.0
      %v2577 = vadd.f32 %v2484, 1.0
      %v2578 = vadd.f32 %v2486, 1.0
      %v2579 = vadd.f32 %v2488, 1.0
      %v2580 = vadd.f32 %v2490, 1.0
      %v2581 = vadd.f32 %v2492, 1.0
      %v2582 = vadd.f32 %v2494, 1.0
      %v2583 = vadd.f32 %v2496, 1.0
      %v2584 = vadd.f32 %v2498, 1.0
      %v2585 = vadd.f32 %v2500, 1.0
      %v2586 = vadd.f32 %v2502, 1.0
      %v2587 = vadd.f32 %v2504, 1.0
      %v2588 = vadd.f32 %v2506, 1.0
      %v2589 = vadd.f32 %v2508, 1.0
      %v2590 = vadd.f32 %v2510, 1.0
      %v2591 = vadd.f32 %v2512, 1.0
      %v2592 = vadd.f32 %v2514, 1.0
      %v2593 = vadd.f32 %v2516, 1.0
      %v2594 = vadd.f32 %v2518, 1.0
      %v2595 = vadd.f32 %v2520, 1.0
      %v2596 = vadd.f32 %v2522, 1.0
      %v2597 = vadd.f32 %v2524, 1.0
      %v2598 = vadd.f32 %v2526, 1.0
      %v2599 = vadd.f32 %v2528, 1.0
      %v2600 = vadd.f32 %v2530, 1.0
      %v2601 = vadd.f32 %v2532, 1.0
      %v2602 = vadd.f32 %v2534, 1.0
      %v2603 = vadd.f32 %v2536, 1.0
      %v2604 = vadd.f32 %v2538, 1.0
      %v2605 = vadd.f32 %v2540, 1.0
      %v2606 = vadd.f32 %v2542, 1.0
      %v2607 = vadd.f32 %v2544, 1.0
      %v2608 = vadd.f32 %v2546, 1.0
      %v2609 = vadd.f32 %v2548, 1.0
      %v2610 = vadd.f32 %v2550, 1.0
      %v2611 = vadd.f32 %v2552, 1.0
      %v2612 = vadd.f32 %v2554, 1.0
      %v2613 = vadd.f32 %v2556, 1.0
      %v2614 = vadd.f32 %v2558, 1.0
      %v2615 = vadd.f32 %v2560, 1.0
      %v2616 = vadd.f32 %v2562, 1.0
      %v2617 = vadd.f32 %v2564, 1.0
      %v2618 = vadd.f32 %v2566, 1.0
      %v2619 = vadd.f32 %v2568, 1.0
      %v2620 = vadd.f32 %v2570, 1.0
      %v2621 = vadd.f32 %v2572, 1.0
      %v2622 = vadd.f32 %v2574, 1.0
      %v2623 = vrcp.pop %v2575
      %v2624 = vmul.f32 1.0, %v2623
      %v2625 = vrcp.pop %v2576
      %v2626 = vmul.f32 1.0, %v2625
      %v2627 = vrcp.pop %v2577
      %v2628 = vmul.f32 1.0, %v2627
      %v2629 = vrcp.pop %v2578
      %v2630 = vmul.f32 1.0, %v2629
      %v2631 = vrcp.pop %v2579
      %v2632 = vmul.f32 1.0, %v2631
      %v2633 = vrcp.pop %v2580
      %v2634 = vmul.f32 1.0, %v2633
      %v2635 = vrcp.pop %v2581
      %v2636 = vmul.f32 1.0, %v2635
      %v2637 = vrcp.pop %v2582
      %v2638 = vmul.f32 1.0, %v2637
      %v2639 = vrcp.pop %v2583
      %v2640 = vmul.f32 1.0, %v2639
      %v2641 = vrcp.pop %v2584
      %v2642 = vmul.f32 1.0, %v2641
      %v2643 = vrcp.pop %v2585
      %v2644 = vmul.f32 1.0, %v2643
      %v2645 = vrcp.pop %v2586
      %v2646 = vmul.f32 1.0, %v2645
      %v2647 = vrcp.pop %v2587
      %v2648 = vmul.f32 1.0, %v2647
      %v2649 = vrcp.pop %v2588
      %v2650 = vmul.f32 1.0, %v2649
      %v2651 = vrcp.pop %v2589
      %v2652 = vmul.f32 1.0, %v2651
      %v2653 = vrcp.pop %v2590
      %v2654 = vmul.f32 1.0, %v2653
      %v2655 = vrcp.pop %v2591
      %v2656 = vmul.f32 1.0, %v2655
      %v2657 = vrcp.pop %v2592
      %v2658 = vmul.f32 1.0, %v2657
      %v2659 = vrcp.pop %v2593
      %v2660 = vmul.f32 1.0, %v2659
      %v2661 = vrcp.pop %v2594
      %v2662 = vmul.f32 1.0, %v2661
      %v2663 = vrcp.pop %v2595
      %v2664 = vmul.f32 1.0, %v2663
      %v2665 = vrcp.pop %v2596
      %v2666 = vmul.f32 1.0, %v2665
      %v2667 = vrcp.pop %v2597
      %v2668 = vmul.f32 1.0, %v2667
      %v2669 = vrcp.pop %v2598
      %v2670 = vmul.f32 1.0, %v2669
      %v2671 = vrcp.pop %v2599
      %v2672 = vmul.f32 1.0, %v2671
      %v2673 = vrcp.pop %v2600
      %v2674 = vmul.f32 1.0, %v2673
      %v2675 = vrcp.pop %v2601
      %v2676 = vmul.f32 1.0, %v2675
      %v2677 = vrcp.pop %v2602
      %v2678 = vmul.f32 1.0, %v2677
      %v2679 = vrcp.pop %v2603
      %v2680 = vmul.f32 1.0, %v2679
      %v2681 = vrcp.pop %v2604
      %v2682 = vmul.f32 1.0, %v2681
      %v2683 = vrcp.pop %v2605
      %v2684 = vmul.f32 1.0, %v2683
      %v2685 = vrcp.pop %v2606
      %v2686 = vmul.f32 1.0, %v2685
      %v2687 = vrcp.pop %v2607
      %v2688 = vmul.f32 1.0, %v2687
      %v2689 = vrcp.pop %v2608
      %v2690 = vmul.f32 1.0, %v2689
      %v2691 = vrcp.pop %v2609
      %v2692 = vmul.f32 1.0, %v2691
      %v2693 = vrcp.pop %v2610
      %v2694 = vmul.f32 1.0, %v2693
      %v2695 = vrcp.pop %v2611
      %v2696 = vmul.f32 1.0, %v2695
      %v2697 = vrcp.pop %v2612
      %v2698 = vmul.f32 1.0, %v2697
      %v2699 = vrcp.pop %v2613
      %v2700 = vmul.f32 1.0, %v2699
      %v2701 = vrcp.pop %v2614
      %v2702 = vmul.f32 1.0, %v2701
      %v2703 = vrcp.pop %v2615
      %v2704 = vmul.f32 1.0, %v2703
      %v2705 = vrcp.pop %v2616
      %v2706 = vmul.f32 1.0, %v2705
      %v2707 = vrcp.pop %v2617
      %v2708 = vmul.f32 1.0, %v2707
      %v2709 = vrcp.pop %v2618
      %v2710 = vmul.f32 1.0, %v2709
      %v2711 = vrcp.pop %v2619
      %v2712 = vmul.f32 1.0, %v2711
      %v2713 = vrcp.pop %v2620
      %v2714 = vmul.f32 1.0, %v2713
      %v2715 = vrcp.pop %v2621
      %v2716 = vmul.f32 1.0, %v2715
      %v2717 = vrcp.pop %v2622
      %v2718 = vmul.f32 1.0, %v2717
      %v2719 = vmul.f32 %v2383, %v2624
      %v2720 = vmul.f32 %v2384, %v2626
      %v2721 = vmul.f32 %v2385, %v2628
      %v2722 = vmul.f32 %v2386, %v2630
      %v2723 = vmul.f32 %v2387, %v2632
      %v2724 = vmul.f32 %v2388, %v2634
      %v2725 = vmul.f32 %v2389, %v2636
      %v2726 = vmul.f32 %v2390, %v2638
      %v2727 = vmul.f32 %v2391, %v2640
      %v2728 = vmul.f32 %v2392, %v2642
      %v2729 = vmul.f32 %v2393, %v2644
      %v2730 = vmul.f32 %v2394, %v2646
      %v2731 = vmul.f32 %v2395, %v2648
      %v2732 = vmul.f32 %v2396, %v2650
      %v2733 = vmul.f32 %v2397, %v2652
      %v2734 = vmul.f32 %v2398, %v2654
      %v2735 = vmul.f32 %v2399, %v2656
      %v2736 = vmul.f32 %v2400, %v2658
      %v2737 = vmul.f32 %v2401, %v2660
      %v2738 = vmul.f32 %v2402, %v2662
      %v2739 = vmul.f32 %v2403, %v2664
      %v2740 = vmul.f32 %v2404, %v2666
      %v2741 = vmul.f32 %v2405, %v2668
      %v2742 = vmul.f32 %v2406, %v2670
      %v2743 = vmul.f32 %v2407, %v2672
      %v2744 = vmul.f32 %v2408, %v2674
      %v2745 = vmul.f32 %v2409, %v2676
      %v2746 = vmul.f32 %v2410, %v2678
      %v2747 = vmul.f32 %v2411, %v2680
      %v2748 = vmul.f32 %v2412, %v2682
      %v2749 = vmul.f32 %v2413, %v2684
      %v2750 = vmul.f32 %v2414, %v2686
      %v2751 = vmul.f32 %v2415, %v2688
      %v2752 = vmul.f32 %v2416, %v2690
      %v2753 = vmul.f32 %v2417, %v2692
      %v2754 = vmul.f32 %v2418, %v2694
      %v2755 = vmul.f32 %v2419, %v2696
      %v2756 = vmul.f32 %v2420, %v2698
      %v2757 = vmul.f32 %v2421, %v2700
      %v2758 = vmul.f32 %v2422, %v2702
      %v2759 = vmul.f32 %v2423, %v2704
      %v2760 = vmul.f32 %v2424, %v2706
      %v2761 = vmul.f32 %v2425, %v2708
      %v2762 = vmul.f32 %v2426, %v2710
      %v2763 = vmul.f32 %v2427, %v2712
      %v2764 = vmul.f32 %v2428, %v2714
      %v2765 = vmul.f32 %v2429, %v2716
      %v2766 = vmul.f32 %v2430, %v2718
      %2767 = vst [vmem:[%s351] sm:$0xff] %v2719
      %2768 = vst [vmem:[%s351 + $0x8] sm:$0xff] %v2720
      %2769 = vst [vmem:[%s351 + $0x10] sm:$0xff] %v2721
      %2770 = vst [vmem:[%s351 + $0x18] sm:$0xff] %v2722
      %2771 = vst [vmem:[%s351 + $0x20] sm:$0xff] %v2723
      %2772 = vst [vmem:[%s351 + $0x28] sm:$0xff] %v2724
      %2773 = vst [vmem:[%s351 + $0x30] sm:$0xff] %v2725
      %2774 = vst [vmem:[%s351 + $0x38] sm:$0xff] %v2726
      %2775 = vst [vmem:[%s351 + $0x40] sm:$0xff] %v2727
      %2776 = vst [vmem:[%s351 + $0x48] sm:$0xff] %v2728
      %2777 = vst [vmem:[%s351 + $0x50] sm:$0xff] %v2729
      %2778 = vst [vmem:[%s351 + $0x58] sm:$0xff] %v2730
      %2779 = vst [vmem:[%s351 + $0x60] sm:$0xff] %v2731
      %2780 = vst [vmem:[%s351 + $0x68] sm:$0xff] %v2732
      %2781 = vst [vmem:[%s351 + $0x70] sm:$0xff] %v2733
      %2782 = vst [vmem:[%s351 + $0x78] sm:$0xff] %v2734
      %2783 = vst [vmem:[%s351 + $0x80] sm:$0xff] %v2735
      %2784 = vst [vmem:[%s351 + $0x88] sm:$0xff] %v2736
      %2785 = vst [vmem:[%s351 + $0x90] sm:$0xff] %v2737
      %2786 = vst [vmem:[%s351 + $0x98] sm:$0xff] %v2738
      %2787 = vst [vmem:[%s351 + $0xa0] sm:$0xff] %v2739
      %2788 = vst [vmem:[%s351 + $0xa8] sm:$0xff] %v2740
      %2789 = vst [vmem:[%s351 + $0xb0] sm:$0xff] %v2741
      %2790 = vst [vmem:[%s351 + $0xb8] sm:$0xff] %v2742
      %2791 = vst [vmem:[%s351 + $0xc0] sm:$0xff] %v2743
      %2792 = vst [vmem:[%s351 + $0xc8] sm:$0xff] %v2744
      %2793 = vst [vmem:[%s351 + $0xd0] sm:$0xff] %v2745
      %2794 = vst [vmem:[%s351 + $0xd8] sm:$0xff] %v2746
      %2795 = vst [vmem:[%s351 + $0xe0] sm:$0xff] %v2747
      %2796 = vst [vmem:[%s351 + $0xe8] sm:$0xff] %v2748
      %2797 = vst [vmem:[%s351 + $0xf0] sm:$0xff] %v2749
      %2798 = vst [vmem:[%s351 + $0xf8] sm:$0xff] %v2750
      %2799 = vst [vmem:[%s351 + $0x100] sm:$0xff] %v2751
      %2800 = vst [vmem:[%s351 + $0x108] sm:$0xff] %v2752
      %2801 = vst [vmem:[%s351 + $0x110] sm:$0xff] %v2753
      %2802 = vst [vmem:[%s351 + $0x118] sm:$0xff] %v2754
      %2803 = vst [vmem:[%s351 + $0x120] sm:$0xff] %v2755
      %2804 = vst [vmem:[%s351 + $0x128] sm:$0xff] %v2756
      %2805 = vst [vmem:[%s351 + $0x130] sm:$0xff] %v2757
      %2806 = vst [vmem:[%s351 + $0x138] sm:$0xff] %v2758
      %2807 = vst [vmem:[%s351 + $0x140] sm:$0xff] %v2759
      %2808 = vst [vmem:[%s351 + $0x148] sm:$0xff] %v2760
      %2809 = vst [vmem:[%s351 + $0x150] sm:$0xff] %v2761
      %2810 = vst [vmem:[%s351 + $0x158] sm:$0xff] %v2762
      %2811 = vst [vmem:[%s351 + $0x160] sm:$0xff] %v2763
      %2812 = vst [vmem:[%s351 + $0x168] sm:$0xff] %v2764
      %2813 = vst [vmem:[%s351 + $0x170] sm:$0xff] %v2765
      %2814 = vst [vmem:[%s351 + $0x178] sm:$0xff] %v2766
      %s2815 = smul.u32 48, %s21
      %p2816 = scmp.lt.s32.totalorder %s20, 1
      %s2817 = scalar_select %p2816, %s20, 1
      %p2818 = scmp.lt.s32.totalorder %s2815, 47
      %s2819 = scalar_select %p2818, %s2815, 47
      %p2820 = scmp.lt.s32.totalorder %s22, 0
      %s2821 = scalar_select %p2820, %s22, 0
      %s2822 = sadd.s32 %s2821, %s2819
      %s2823 = smul.addr %s2817, 48
      %s2824 = sadd.s32 %s2822, %s2823
      %s2825 = smul.addr %s2824, 8
      %s2826 = scalar_lea.vmem %s4, %s2825
      // Predicated region
      $region37: #{conv2_forward.1} parent=35 // pred_check
        %p2827 = pneg %p168
      $region38: #{conv2_forward.1} parent=35 // pred_check_branch
        %2829 = sbr.rel (%p2827) target = $region40
      $region39: #{conv2_forward.1} parent=35 // pred_region
        %s2830 = smul.u32 48, %s21
      $region40: #{conv2_forward.1} parent=35 // pred_fallthru
        _
    $region36: #{conv2_forward.1} parent=5 // pred_fallthru
      _
    %p2831 = scmp.le.s32.totalorder 2, %s10
    // Predicated region
    $region41: #{conv2_forward.1} parent=5 // pred_check
      %p2832 = pneg %p2831
    $region42: #{conv2_forward.1} parent=5 // pred_check_branch
      %2834 = sbr.rel (%p2832) target = $region44
    $region43: #{conv2_forward.1} parent=5 // pred_region
      %s2835 = ssub.s32 %s10, 2
      // Predicated region
      $region45: #{conv2_forward.1} parent=43 // pred_check
        %p2836 = pneg %p174
      $region46: #{conv2_forward.1} parent=43 // pred_check_branch
        %2838 = sbr.rel (%p2836) target = $region48
      $region47: #{conv2_forward.1} parent=43 // pred_region
        %s2839 = smul.u32 48, %s24
        %p2840 = scmp.lt.s32.totalorder %s23, 1
        %s2841 = scalar_select %p2840, %s23, 1
        %p2842 = scmp.lt.s32.totalorder %s2839, 47
        %s2843 = scalar_select %p2842, %s2839, 47
        %p2844 = scmp.lt.s32.totalorder %s25, 0
        %s2845 = scalar_select %p2844, %s25, 0
        %s2846 = sadd.s32 %s2845, %s2843
        %s2847 = smul.addr %s2841, 48
        %s2848 = sadd.s32 %s2846, %s2847
        %s2849 = smul.addr %s2848, 8
        %s2850 = scalar_lea.vmem %s4, %s2849
      $region48: #{conv2_forward.1} parent=43 // pred_fallthru
        _
    $region44: #{conv2_forward.1} parent=5 // pred_fallthru
      _
  $region6: #{conv2_forward.1} parent=0 // loop_footer
    %s14 = sadd.s32 1, %s10
  $region7: #{conv2_forward.1} parent=0 // loop_footer_branch
    %9 = sbr.rel target = $region3
  $region8: #{conv2_forward.1} parent=0 // loop_exit
    _

</llo_original>
